<compile_context>
chip_gen: v7x
topology: tpu7x:2x2x1
jax: 0.10.0
libtpu: 0.0.40
codegen_flags: <defaults>
</compile_context>

<pallas_src>
import functools

import jax
import jax.numpy as jnp
from jax.experimental import pallas as pl
from jax.experimental.pallas import tpu as pltpu


def lnsde_fused_kernel(
    x_ref,        # [TB, D_in]      activation tile (advances with grid)
    w_enc_ref,    # [D_in, 2H]      fused encoder (drift | noise-from-step)   (resident)
    b_enc_ref,    # [1, 2H]
    relu_m_ref,   # [1, 2H]         1.0 on drift lanes, 0.0 on noise lanes    (resident)
    w_hid_ref,    # [L, 2H, 2H]     blockdiag(dws[l], nws[l])                 (resident)
    b_hid_ref,    # [L, 1, 2H]
    w_last_ref,   # [2H, 2*D_out]   block-antidiag -> output = (noise | drift)(resident)
    b_last_ref,   # [1, 2*D_out]    (noise bias | drift bias)
    sel_ref,      # [1, 2*D_out]    1.0 on noise lanes, 0.0 on drift lanes    (resident)
    out_ref,      # [2*D_out, TB]   rows = (noise | drift), lane-dense store
    *, n_hidden_layers, residual, d_out,
):
    x = x_ref[...]

    # Fused encoder: drift half = Linear + ReLU, noise half = bare Linear
    # (noise_encoder has no activation) -> masked ReLU via resident mask.
    y = jnp.dot(x, w_enc_ref[...], preferred_element_type=jnp.float32) + b_enc_ref[...]
    y = y - relu_m_ref[...] * jnp.minimum(y, 0.0)

    # Hidden blocks: Linear + ReLU on both halves, residual add when enabled.
    for l in range(n_hidden_layers):
        upd = jnp.dot(y, w_hid_ref[l], preferred_element_type=jnp.float32) + b_hid_ref[l]
        upd = jnp.maximum(upd, 0.0)
        y = y + upd if residual else upd

    # Final (non-residual) block; output lanes ordered (noise | drift).
    out = jnp.dot(y, w_last_ref[...], preferred_element_type=jnp.float32) + b_last_ref[...]
    out = jnp.maximum(out, 0.0)

    # noise *= current_state.  Noise occupies lanes [0, d_out) and
    # current_state = x[:, :d_out] is already in the resident x tile, so the
    # modulator costs no extra HBM stream: sel picks it on noise lanes, 1 elsewhere.
    sel = sel_ref[...]
    factor = sel * x[:, : 2 * d_out] + (1.0 - sel)
    out = out * factor

    # Lane-dense store: [2*d_out, tile_b] (last dim >= 128 -> unmasked vst).
    out_ref[...] = out.T.astype(out_ref.dtype)


def fuse_lnsde_params(params, *, rep):
    """One-time fusion of the drift/noise weights (call at parameter init, not
    per forward): block-diagonal hidden layers, a step-embedding encoder, a
    block-anti-diagonal final layer, and the tiny lane masks."""
    we, be = params["we"], params["be"]        # [d_in, H], [1, H]
    wn, bn = params["wn"], params["bn"]        # [rep, H], [1, H]
    dws, dbs = params["dws"], params["dbs"]    # [L, H, H], [L, 1, H]
    nws, nbs = params["nws"], params["nbs"]
    dwl, dbl = params["dwl"], params["dbl"]    # [H, d_out], [1, d_out]
    nwl, nbl = params["nwl"], params["nbl"]

    d_in, H = we.shape
    d_out = dwl.shape[1]
    assert d_out == rep, "noise * current_state requires output_dim == representation_dim"
    assert d_in >= 3 * rep, "step slice x[:, 2*rep:3*rep] requires input_dim >= 3*rep"

    # Encoder: x @ w_enc -> [drift(H) | noise(H)].  The noise half reads only
    # the `step` rows (2*rep:3*rep) of x -> no per-call concat(x, step).
    wn_full = jnp.zeros((d_in, H), we.dtype).at[2 * rep: 3 * rep, :].set(wn)
    w_enc = jnp.concatenate([we, wn_full], axis=1)                 # [d_in, 2H]
    b_enc = jnp.concatenate([be, bn], axis=1)                      # [1, 2H]

    def blockdiag(a, b):
        m, n = a.shape
        p, q = b.shape
        top = jnp.concatenate([a, jnp.zeros((m, q), a.dtype)], axis=1)
        bot = jnp.concatenate([jnp.zeros((p, n), b.dtype), b], axis=1)
        return jnp.concatenate([top, bot], axis=0)

    w_hid = jax.vmap(blockdiag)(dws, nws)                          # [L, 2H, 2H]
    b_hid = jnp.concatenate([dbs, nbs], axis=-1)                   # [L, 1, 2H]

    # Final layer block-ANTI-diagonal: state (drift | noise) -> output (noise | drift).
    top = jnp.concatenate([jnp.zeros((H, d_out), dwl.dtype), dwl], axis=1)
    bot = jnp.concatenate([nwl, jnp.zeros((H, d_out), nwl.dtype)], axis=1)
    w_last = jnp.concatenate([top, bot], axis=0)                   # [2H, 2*d_out]
    b_last = jnp.concatenate([nbl, dbl], axis=1)                   # [1, 2*d_out]

    relu_mask = jnp.concatenate(
        [jnp.ones((1, H), we.dtype), jnp.zeros((1, H), we.dtype)], axis=1)
    sel = jnp.concatenate(
        [jnp.ones((1, d_out), we.dtype), jnp.zeros((1, d_out), we.dtype)], axis=1)

    return dict(w_enc=w_enc, b_enc=b_enc, relu_mask=relu_mask,
                w_hid=w_hid, b_hid=b_hid, w_last=w_last, b_last=b_last, sel=sel)


def lnsde_forward(x, fused, *, residual, tile_b=None):
    """Fused LNSDE forward.  `fused` comes from fuse_lnsde_params (built once)."""
    B, d_in = x.shape
    L = fused["w_hid"].shape[0]
    d2 = fused["w_last"].shape[1]
    d_out = d2 // 2

    if tile_b is None:
        # Single-TC chips (v5e/v6e): one grid step amortizes per-step pipeline
        # overhead; per-tile compute is tiny so fewer/bigger steps win.
        # On dual-TC v7x pass tile_b explicitly (e.g. B // 4) so the "parallel"
        # axis shards across cores with >=2 steps per core for DMA overlap.
        tile_b = B if B <= 4096 else 2048
    assert B % tile_b == 0, "pad the batch to a multiple of tile_b in the caller"
    assert tile_b == B or tile_b % 128 == 0

    grid = (B // tile_b,)

    def resident(a):  # weights/masks: constant block index -> DMA'd once, stay VMEM-resident
        shp = a.shape
        return pl.BlockSpec(shp, lambda i, _n=len(shp): (0,) * _n)

    in_specs = [
        pl.BlockSpec((tile_b, d_in), lambda i: (i, 0)),            # x tile
        resident(fused["w_enc"]), resident(fused["b_enc"]), resident(fused["relu_mask"]),
        resident(fused["w_hid"]), resident(fused["b_hid"]),
        resident(fused["w_last"]), resident(fused["b_last"]), resident(fused["sel"]),
    ]
    out_specs = pl.BlockSpec((d2, tile_b), lambda i: (0, i))        # lane-dense output

    kernel = functools.partial(
        lnsde_fused_kernel, n_hidden_layers=L, residual=residual, d_out=d_out)

    out_t = pl.pallas_call(
        kernel,
        out_shape=jax.ShapeDtypeStruct((d2, B), x.dtype),
        grid=grid,
        in_specs=in_specs,
        out_specs=out_specs,
        compiler_params=pltpu.CompilerParams(dimension_semantics=("parallel",)),
    )(x, fused["w_enc"], fused["b_enc"], fused["relu_mask"],
      fused["w_hid"], fused["b_hid"], fused["w_last"], fused["b_last"], fused["sel"])

    noise = out_t[:d_out, :].T
    drift = out_t[d_out:, :].T
    return drift, noise


def _reference(x, params, *, rep, residual):
    """Pure-JAX reference mirroring the PyTorch forward (un-fused weights)."""
    relu = lambda v: jnp.maximum(v, 0.0)
    drift = relu(x @ params["we"] + params["be"])
    current_state = x[:, :rep]
    step = x[:, 2 * rep: 3 * rep]
    noise = step @ params["wn"] + params["bn"]
    L = params["dws"].shape[0]
    for l in range(L):
        du = relu(drift @ params["dws"][l] + params["dbs"][l])
        nu = relu(noise @ params["nws"][l] + params["nbs"][l])
        if residual:
            drift, noise = drift + du, noise + nu
        else:
            drift, noise = du, nu
    drift = relu(drift @ params["dwl"] + params["dbl"])
    noise = relu(noise @ params["nwl"] + params["nbl"])
    noise = noise * current_state
    return drift, noise


if __name__ == "__main__":
    # Shapes consistent with the module; batch is stacked independent evaluations.
    B = 256
    INPUT_DIM = 32
    HIDDEN = 32
    LAYERS = 2                     # cfg.model.layers -> 2 hidden blocks + 1 final
    REP = INPUT_DIM // 4           # cfg.training.repeat = True
    OUTPUT_DIM = REP               # noise * current_state requires this
    RESIDUAL = True

    key = jax.random.PRNGKey(0)
    keys = jax.random.split(key, 16)

    def init_linear(k, fan_in, fan_out):
        # deterministic init; weight stored pre-transposed as [in, out]
        kw, kb = jax.random.split(k)
        scale = 1.0 / jnp.sqrt(jnp.float32(fan_in))
        w = jax.random.uniform(kw, (fan_in, fan_out), jnp.float32, -scale, scale)
        b = jax.random.uniform(kb, (1, fan_out), jnp.float32, -scale, scale)
        return w, b

    we, be = init_linear(keys[0], INPUT_DIM, HIDDEN)
    wn, bn = init_linear(keys[1], REP, HIDDEN)     # noise_dim = REP (repeat=True)

    dws, dbs, nws, nbs = [], [], [], []
    for i in range(LAYERS):
        w, b = init_linear(keys[2 + i], HIDDEN, HIDDEN)
        dws.append(w); dbs.append(b[None])
        w, b = init_linear(keys[6 + i], HIDDEN, HIDDEN)
        nws.append(w); nbs.append(b[None])
    dws = jnp.stack(dws); dbs = jnp.concatenate(dbs, axis=0)   # [L,H,H], [L,1,H]
    nws = jnp.stack(nws); nbs = jnp.concatenate(nbs, axis=0)

    dwl, dbl = init_linear(keys[10], HIDDEN, OUTPUT_DIM)
    nwl, nbl = init_linear(keys[11], HIDDEN, OUTPUT_DIM)

    params = dict(
        we=we, be=be, wn=wn, bn=bn,
        dws=dws, dbs=dbs, nws=nws, nbs=nbs,
        dwl=dwl, dbl=dbl, nwl=nwl, nbl=nbl,
    )

    # One-time weight fusion (hoisted out of the per-call path).
    fused = jax.tree_util.tree_map(jax.block_until_ready,
                                   fuse_lnsde_params(params, rep=REP))

    x = jax.random.normal(keys[12], (B, INPUT_DIM), jnp.float32)
    drift_ref, noise_ref = _reference(x, params, rep=REP, residual=RESIDUAL)

    # Default tiling: whole batch in one grid step (best on single-TC v5e/v6e).
    drift, noise = lnsde_forward(x, fused, residual=RESIDUAL)
    drift = jax.block_until_ready(drift)
    noise = jax.block_until_ready(noise)
    assert jnp.allclose(drift, drift_ref, atol=1e-5, rtol=1e-5)
    assert jnp.allclose(noise, noise_ref, atol=1e-5, rtol=1e-5)

    # Multi-step grid (exercises pipelining / the v7x-style sharded config).
    drift2, noise2 = lnsde_forward(x, fused, residual=RESIDUAL, tile_b=128)
    drift2 = jax.block_until_ready(drift2)
    noise2 = jax.block_until_ready(noise2)
    assert jnp.allclose(drift2, drift_ref, atol=1e-5, rtol=1e-5)
    assert jnp.allclose(noise2, noise_ref, atol=1e-5, rtol=1e-5)

    print("KERNEL_OK")
</pallas_src>

<mosaic_0001>
module attributes {stable_mosaic.version = 11 : i64} {
  func.func @lnsde_fused_kernel(%arg0: i32, %arg1: memref<256x32xf32, #tpu.memory_space<vmem>>, %arg2: memref<32x64xf32, #tpu.memory_space<vmem>>, %arg3: memref<1x64xf32, #tpu.memory_space<vmem>>, %arg4: memref<1x64xf32, #tpu.memory_space<vmem>>, %arg5: memref<2x64x64xf32, #tpu.memory_space<vmem>>, %arg6: memref<2x1x64xf32, #tpu.memory_space<vmem>>, %arg7: memref<64x16xf32, #tpu.memory_space<vmem>>, %arg8: memref<1x16xf32, #tpu.memory_space<vmem>>, %arg9: memref<1x16xf32, #tpu.memory_space<vmem>>, %arg10: memref<16x256xf32, #tpu.memory_space<vmem>>) attributes {dimension_semantics = [#tpu.dimension_semantics<parallel>], iteration_bounds = array<i64: 1>, scalar_prefetch = 0 : i64, scratch_operands = 0 : i64, tpu.core_type = #tpu.core_type<tc>, window_params = [{transform_indices = @transform_0, window_bounds = array<i64: 256, 32>}, {pipeline_mode = #tpu.pipeline_mode<synchronous>, transform_indices = @transform_1, window_bounds = array<i64: 32, 64>}, {pipeline_mode = #tpu.pipeline_mode<synchronous>, transform_indices = @transform_2, window_bounds = array<i64: 1, 64>}, {pipeline_mode = #tpu.pipeline_mode<synchronous>, transform_indices = @transform_3, window_bounds = array<i64: 1, 64>}, {pipeline_mode = #tpu.pipeline_mode<synchronous>, transform_indices = @transform_4, window_bounds = array<i64: 2, 64, 64>}, {pipeline_mode = #tpu.pipeline_mode<synchronous>, transform_indices = @transform_5, window_bounds = array<i64: 2, 1, 64>}, {pipeline_mode = #tpu.pipeline_mode<synchronous>, transform_indices = @transform_6, window_bounds = array<i64: 64, 16>}, {pipeline_mode = #tpu.pipeline_mode<synchronous>, transform_indices = @transform_7, window_bounds = array<i64: 1, 16>}, {pipeline_mode = #tpu.pipeline_mode<synchronous>, transform_indices = @transform_8, window_bounds = array<i64: 1, 16>}, {transform_indices = @transform_9, window_bounds = array<i64: 16, 256>}]} {
    %c0 = arith.constant 0 : index
    %c0_0 = arith.constant 0 : index
    %0 = vector.load %arg1[%c0, %c0_0] : memref<256x32xf32, #tpu.memory_space<vmem>>, vector<256x32xf32>
    %c0_1 = arith.constant 0 : index
    %c0_2 = arith.constant 0 : index
    %1 = vector.load %arg2[%c0_1, %c0_2] : memref<32x64xf32, #tpu.memory_space<vmem>>, vector<32x64xf32>
    %cst = arith.constant dense<0.000000e+00> : vector<256x64xf32>
    %2 = tpu.matmul %0, %1, %cst {dimension_numbers = #tpu.dot_dimension_numbers<[1], [0], [0], [1], [0, 0, 1, 1], [], []>} : vector<256x32xf32>, vector<32x64xf32>, vector<256x64xf32> -> vector<256x64xf32>
    %c0_3 = arith.constant 0 : index
    %c0_4 = arith.constant 0 : index
    %3 = vector.load %arg3[%c0_3, %c0_4] : memref<1x64xf32, #tpu.memory_space<vmem>>, vector<1x64xf32>
    %4 = vector.broadcast %3 : vector<1x64xf32> to vector<256x64xf32>
    %5 = arith.addf %2, %4 : vector<256x64xf32>
    %c0_5 = arith.constant 0 : index
    %c0_6 = arith.constant 0 : index
    %6 = vector.load %arg4[%c0_5, %c0_6] : memref<1x64xf32, #tpu.memory_space<vmem>>, vector<1x64xf32>
    %cst_7 = arith.constant 0.000000e+00 : f32
    %7 = vector.broadcast %cst_7 : f32 to vector<256x64xf32>
    %8 = arith.minimumf %5, %7 : vector<256x64xf32>
    %9 = vector.broadcast %6 : vector<1x64xf32> to vector<256x64xf32>
    %10 = arith.mulf %9, %8 : vector<256x64xf32>
    %11 = arith.subf %5, %10 : vector<256x64xf32>
    %c0_8 = arith.constant 0 : index
    %c0_9 = arith.constant 0 : index
    %c0_10 = arith.constant 0 : index
    %12 = vector.load %arg5[%c0_8, %c0_9, %c0_10] : memref<2x64x64xf32, #tpu.memory_space<vmem>>, vector<1x64x64xf32>
    %13 = vector.shape_cast %12 : vector<1x64x64xf32> to vector<64x64xf32>
    %cst_11 = arith.constant dense<0.000000e+00> : vector<256x64xf32>
    %14 = tpu.matmul %11, %13, %cst_11 {dimension_numbers = #tpu.dot_dimension_numbers<[1], [0], [0], [1], [0, 0, 1, 1], [], []>} : vector<256x64xf32>, vector<64x64xf32>, vector<256x64xf32> -> vector<256x64xf32>
    %c0_12 = arith.constant 0 : index
    %c0_13 = arith.constant 0 : index
    %c0_14 = arith.constant 0 : index
    %15 = vector.load %arg6[%c0_12, %c0_13, %c0_14] : memref<2x1x64xf32, #tpu.memory_space<vmem>>, vector<1x1x64xf32>
    %16 = vector.shape_cast %15 : vector<1x1x64xf32> to vector<1x64xf32>
    %17 = vector.broadcast %16 : vector<1x64xf32> to vector<256x64xf32>
    %18 = arith.addf %14, %17 : vector<256x64xf32>
    %cst_15 = arith.constant 0.000000e+00 : f32
    %19 = vector.broadcast %cst_15 : f32 to vector<256x64xf32>
    %20 = arith.maximumf %18, %19 : vector<256x64xf32>
    %21 = arith.addf %11, %20 : vector<256x64xf32>
    %c1 = arith.constant 1 : index
    %c0_16 = arith.constant 0 : index
    %c0_17 = arith.constant 0 : index
    %22 = vector.load %arg5[%c1, %c0_16, %c0_17] : memref<2x64x64xf32, #tpu.memory_space<vmem>>, vector<1x64x64xf32>
    %23 = vector.shape_cast %22 : vector<1x64x64xf32> to vector<64x64xf32>
    %cst_18 = arith.constant dense<0.000000e+00> : vector<256x64xf32>
    %24 = tpu.matmul %21, %23, %cst_18 {dimension_numbers = #tpu.dot_dimension_numbers<[1], [0], [0], [1], [0, 0, 1, 1], [], []>} : vector<256x64xf32>, vector<64x64xf32>, vector<256x64xf32> -> vector<256x64xf32>
    %c1_19 = arith.constant 1 : index
    %c0_20 = arith.constant 0 : index
    %c0_21 = arith.constant 0 : index
    %25 = vector.load %arg6[%c1_19, %c0_20, %c0_21] : memref<2x1x64xf32, #tpu.memory_space<vmem>>, vector<1x1x64xf32>
    %26 = vector.shape_cast %25 : vector<1x1x64xf32> to vector<1x64xf32>
    %27 = vector.broadcast %26 : vector<1x64xf32> to vector<256x64xf32>
    %28 = arith.addf %24, %27 : vector<256x64xf32>
    %cst_22 = arith.constant 0.000000e+00 : f32
    %29 = vector.broadcast %cst_22 : f32 to vector<256x64xf32>
    %30 = arith.maximumf %28, %29 : vector<256x64xf32>
    %31 = arith.addf %21, %30 : vector<256x64xf32>
    %c0_23 = arith.constant 0 : index
    %c0_24 = arith.constant 0 : index
    %32 = vector.load %arg7[%c0_23, %c0_24] : memref<64x16xf32, #tpu.memory_space<vmem>>, vector<64x16xf32>
    %cst_25 = arith.constant dense<0.000000e+00> : vector<256x16xf32>
    %33 = tpu.matmul %31, %32, %cst_25 {dimension_numbers = #tpu.dot_dimension_numbers<[1], [0], [0], [1], [0, 0, 1, 1], [], []>} : vector<256x64xf32>, vector<64x16xf32>, vector<256x16xf32> -> vector<256x16xf32>
    %c0_26 = arith.constant 0 : index
    %c0_27 = arith.constant 0 : index
    %34 = vector.load %arg8[%c0_26, %c0_27] : memref<1x16xf32, #tpu.memory_space<vmem>>, vector<1x16xf32>
    %35 = vector.broadcast %34 : vector<1x16xf32> to vector<256x16xf32>
    %36 = arith.addf %33, %35 : vector<256x16xf32>
    %cst_28 = arith.constant 0.000000e+00 : f32
    %37 = vector.broadcast %cst_28 : f32 to vector<256x16xf32>
    %38 = arith.maximumf %36, %37 : vector<256x16xf32>
    %c0_29 = arith.constant 0 : index
    %c0_30 = arith.constant 0 : index
    %39 = vector.load %arg9[%c0_29, %c0_30] : memref<1x16xf32, #tpu.memory_space<vmem>>, vector<1x16xf32>
    %40 = vector.extract_strided_slice %0 {offsets = [0, 0], sizes = [256, 16], strides = [1, 1]} : vector<256x32xf32> to vector<256x16xf32>
    %41 = vector.broadcast %39 : vector<1x16xf32> to vector<256x16xf32>
    %42 = arith.mulf %41, %40 : vector<256x16xf32>
    %cst_31 = arith.constant 1.000000e+00 : f32
    %43 = vector.broadcast %cst_31 : f32 to vector<1x16xf32>
    %44 = arith.subf %43, %39 : vector<1x16xf32>
    %45 = vector.broadcast %44 : vector<1x16xf32> to vector<256x16xf32>
    %46 = arith.addf %42, %45 : vector<256x16xf32>
    %47 = arith.mulf %38, %46 : vector<256x16xf32>
    %48 = tpu.transpose %47, [1, 0] : vector<256x16xf32> -> vector<16x256xf32>
    %c0_32 = arith.constant 0 : index
    %c0_33 = arith.constant 0 : index
    %49 = vector.load %arg10[%c0_32, %c0_33] : memref<16x256xf32, #tpu.memory_space<vmem>>, vector<16x256xf32>
    tpu.vector_store %arg10[%c0_32, %c0_33], %48 {strides = array<i32>} : memref<16x256xf32, #tpu.memory_space<vmem>>, vector<16x256xf32>,
    return
  }
  func.func @transform_0(%arg0: i32) -> (i32, i32) {
    %c0_i32 = arith.constant 0 : i32
    %c0_i32_0 = arith.constant 0 : i32
    return %arg0, %c0_i32 : i32, i32
  }
  func.func @transform_1(%arg0: i32) -> (i32, i32) {
    %c0_i32 = arith.constant 0 : i32
    %c0_i32_0 = arith.constant 0 : i32
    %c0_i32_1 = arith.constant 0 : i32
    return %c0_i32, %c0_i32_0 : i32, i32
  }
  func.func @transform_2(%arg0: i32) -> (i32, i32) {
    %c0_i32 = arith.constant 0 : i32
    %c0_i32_0 = arith.constant 0 : i32
    %c0_i32_1 = arith.constant 0 : i32
    return %c0_i32, %c0_i32_0 : i32, i32
  }
  func.func @transform_3(%arg0: i32) -> (i32, i32) {
    %c0_i32 = arith.constant 0 : i32
    %c0_i32_0 = arith.constant 0 : i32
    %c0_i32_1 = arith.constant 0 : i32
    return %c0_i32, %c0_i32_0 : i32, i32
  }
  func.func @transform_4(%arg0: i32) -> (i32, i32, i32) {
    %c0_i32 = arith.constant 0 : i32
    %c0_i32_0 = arith.constant 0 : i32
    %c0_i32_1 = arith.constant 0 : i32
    %c0_i32_2 = arith.constant 0 : i32
    return %c0_i32, %c0_i32_0, %c0_i32_1 : i32, i32, i32
  }
  func.func @transform_5(%arg0: i32) -> (i32, i32, i32) {
    %c0_i32 = arith.constant 0 : i32
    %c0_i32_0 = arith.constant 0 : i32
    %c0_i32_1 = arith.constant 0 : i32
    %c0_i32_2 = arith.constant 0 : i32
    return %c0_i32, %c0_i32_0, %c0_i32_1 : i32, i32, i32
  }
  func.func @transform_6(%arg0: i32) -> (i32, i32) {
    %c0_i32 = arith.constant 0 : i32
    %c0_i32_0 = arith.constant 0 : i32
    %c0_i32_1 = arith.constant 0 : i32
    return %c0_i32, %c0_i32_0 : i32, i32
  }
  func.func @transform_7(%arg0: i32) -> (i32, i32) {
    %c0_i32 = arith.constant 0 : i32
    %c0_i32_0 = arith.constant 0 : i32
    %c0_i32_1 = arith.constant 0 : i32
    return %c0_i32, %c0_i32_0 : i32, i32
  }
  func.func @transform_8(%arg0: i32) -> (i32, i32) {
    %c0_i32 = arith.constant 0 : i32
    %c0_i32_0 = arith.constant 0 : i32
    %c0_i32_1 = arith.constant 0 : i32
    return %c0_i32, %c0_i32_0 : i32, i32
  }
  func.func @transform_9(%arg0: i32) -> (i32, i32) {
    %c0_i32 = arith.constant 0 : i32
    %c0_i32_0 = arith.constant 0 : i32
    return %c0_i32, %arg0 : i32, i32
  }
}

</mosaic_0001>

<llo_original>
// kernel: tpu_custom_call.1
$region0: #{tpu_custom_call.1}
  #allocation0 [shape = 'u32[]', space=smem, size = 0x4, offset = 0x4, fixed_abs, tag = 'smem constant byte address 0x4 - core index']
  #allocation1 [shape = 'u32[144,128]{1,0:T(1,128)}', space=vmem, size = 0x12000, scoped, tag = 'internal scratch']
  %s0 = inlined_call_operand.vmem [shape: f32[256,32], index: 0, kind: input, shape index: {}]
  %s1 = inlined_call_operand.vmem [shape: f32[32,64], index: 1, kind: input, shape index: {}]
  %s2 = inlined_call_operand.vmem [shape: f32[1,64], index: 2, kind: input, shape index: {}]
  %s3 = inlined_call_operand.vmem [shape: f32[1,64], index: 3, kind: input, shape index: {}]
  %s4 = inlined_call_operand.vmem [shape: f32[2,64,64], index: 4, kind: input, shape index: {}]
  %s5 = inlined_call_operand.vmem [shape: f32[2,1,64], index: 5, kind: input, shape index: {}]
  %s6 = inlined_call_operand.vmem [shape: f32[64,16], index: 6, kind: input, shape index: {}]
  %s7 = inlined_call_operand.vmem [shape: f32[1,16], index: 7, kind: input, shape index: {}]
  %s8 = inlined_call_operand.vmem [shape: f32[1,16], index: 8, kind: input, shape index: {}]
  %s9 = inlined_call_operand.hbm [shape: f32[16,256], index: 9, kind: output, shape index: {}]
  %s10 = sld [smem:[#allocation0]]
  $region46: #{tpu_custom_call.1} parent=0
    _
  %s12 = ssub.s32 1, %s10
  %s13 = scalar_select 0, %s12, %s10
  $region1: #{tpu_custom_call.1} parent=0
    #allocation2 [shape = 'u8[16384]{0}', space=vmem, size = 0x4000, scoped, tag = 'output window, operand 0, single buffered']
    #allocation3 [shape = 's32[1]{0}', space=sflag, size = 0x4, scoped, tag = 'scoped memory for tpu_custom_call.1']
    %14 = vsyncpa [#allocation3], 0
    // Predicated region
    $region2: #{tpu_custom_call.1} parent=1 // pred_check
      _
    $region3: #{tpu_custom_call.1} parent=1 // pred_check_branch
      %16 = sbr.rel (0) target = $region5
    $region4: #{tpu_custom_call.1} parent=1 // pred_region
      _
    $region5: #{tpu_custom_call.1} parent=1 // pred_fallthru
      _
    // Predicated region
    $region6: #{tpu_custom_call.1} parent=1 // pred_check
      _
    $region7: #{tpu_custom_call.1} parent=1 // pred_check_branch
      %18 = sbr.rel (0) target = $region9
    $region8: #{tpu_custom_call.1} parent=1 // pred_region
      _
    $region9: #{tpu_custom_call.1} parent=1 // pred_fallthru
      _
    // Predicated region
    $region10: #{tpu_custom_call.1} parent=1 // pred_check
      _
    $region11: #{tpu_custom_call.1} parent=1 // pred_check_branch
      %20 = sbr.rel (0) target = $region13
    $region12: #{tpu_custom_call.1} parent=1 // pred_region
      _
    $region13: #{tpu_custom_call.1} parent=1 // pred_fallthru
      _
    // Predicated region
    $region14: #{tpu_custom_call.1} parent=1 // pred_check
      _
    $region15: #{tpu_custom_call.1} parent=1 // pred_check_branch
      %22 = sbr.rel (0) target = $region17
    $region16: #{tpu_custom_call.1} parent=1 // pred_region
      _
    $region17: #{tpu_custom_call.1} parent=1 // pred_fallthru
      _
    // Predicated region
    $region18: #{tpu_custom_call.1} parent=1 // pred_check
      _
    $region19: #{tpu_custom_call.1} parent=1 // pred_check_branch
      %24 = sbr.rel (0) target = $region21
    $region20: #{tpu_custom_call.1} parent=1 // pred_region
      _
    $region21: #{tpu_custom_call.1} parent=1 // pred_fallthru
      _
    // Predicated region
    $region22: #{tpu_custom_call.1} parent=1 // pred_check
      _
    $region23: #{tpu_custom_call.1} parent=1 // pred_check_branch
      %26 = sbr.rel (0) target = $region25
    $region24: #{tpu_custom_call.1} parent=1 // pred_region
      _
    $region25: #{tpu_custom_call.1} parent=1 // pred_fallthru
      _
    // Predicated region
    $region26: #{tpu_custom_call.1} parent=1 // pred_check
      _
    $region27: #{tpu_custom_call.1} parent=1 // pred_check_branch
      %28 = sbr.rel (0) target = $region29
    $region28: #{tpu_custom_call.1} parent=1 // pred_region
      _
    $region29: #{tpu_custom_call.1} parent=1 // pred_fallthru
      _
    // Predicated region
    $region30: #{tpu_custom_call.1} parent=1 // pred_check
      _
    $region31: #{tpu_custom_call.1} parent=1 // pred_check_branch
      %30 = sbr.rel (0) target = $region33
    $region32: #{tpu_custom_call.1} parent=1 // pred_region
      _
    $region33: #{tpu_custom_call.1} parent=1 // pred_fallthru
      _
    // Predicated region
    $region34: #{tpu_custom_call.1} parent=1 // pred_check
      _
    $region35: #{tpu_custom_call.1} parent=1 // pred_check_branch
      %32 = sbr.rel (0) target = $region37
    $region36: #{tpu_custom_call.1} parent=1 // pred_region
      _
    $region37: #{tpu_custom_call.1} parent=1 // pred_fallthru
      _
    %v33 = vld [vmem:[%s0] sm:$0xff]
    %v34 = vld [vmem:[%s0 + $0x8] sm:$0xff]
    %v35 = vld [vmem:[%s0 + $0x10] sm:$0xff]
    %v36 = vld [vmem:[%s0 + $0x18] sm:$0xff]
    %v37 = vld [vmem:[%s0 + $0x20] sm:$0xff]
    %v38 = vld [vmem:[%s0 + $0x28] sm:$0xff]
    %v39 = vld [vmem:[%s0 + $0x30] sm:$0xff]
    %v40 = vld [vmem:[%s0 + $0x38] sm:$0xff]
    %v41 = vld [vmem:[%s0 + $0x40] sm:$0xff]
    %v42 = vld [vmem:[%s0 + $0x48] sm:$0xff]
    %v43 = vld [vmem:[%s0 + $0x50] sm:$0xff]
    %v44 = vld [vmem:[%s0 + $0x58] sm:$0xff]
    %v45 = vld [vmem:[%s0 + $0x60] sm:$0xff]
    %v46 = vld [vmem:[%s0 + $0x68] sm:$0xff]
    %v47 = vld [vmem:[%s0 + $0x70] sm:$0xff]
    %v48 = vld [vmem:[%s0 + $0x78] sm:$0xff]
    %v49 = vld [vmem:[%s0 + $0x80] sm:$0xff]
    %v50 = vld [vmem:[%s0 + $0x88] sm:$0xff]
    %v51 = vld [vmem:[%s0 + $0x90] sm:$0xff]
    %v52 = vld [vmem:[%s0 + $0x98] sm:$0xff]
    %v53 = vld [vmem:[%s0 + $0xa0] sm:$0xff]
    %v54 = vld [vmem:[%s0 + $0xa8] sm:$0xff]
    %v55 = vld [vmem:[%s0 + $0xb0] sm:$0xff]
    %v56 = vld [vmem:[%s0 + $0xb8] sm:$0xff]
    %v57 = vld [vmem:[%s0 + $0xc0] sm:$0xff]
    %v58 = vld [vmem:[%s0 + $0xc8] sm:$0xff]
    %v59 = vld [vmem:[%s0 + $0xd0] sm:$0xff]
    %v60 = vld [vmem:[%s0 + $0xd8] sm:$0xff]
    %v61 = vld [vmem:[%s0 + $0xe0] sm:$0xff]
    %v62 = vld [vmem:[%s0 + $0xe8] sm:$0xff]
    %v63 = vld [vmem:[%s0 + $0xf0] sm:$0xff]
    %v64 = vld [vmem:[%s0 + $0xf8] sm:$0xff]
    %v65 = vld [vmem:[%s1] sm:$0xff]
    %v66 = vld [vmem:[%s1 + $0x8] sm:$0xff]
    %v67 = vld [vmem:[%s1 + $0x10] sm:$0xff]
    %v68 = vld [vmem:[%s1 + $0x18] sm:$0xff]
    %v69 = vld [vmem:[%s2] sm:$0x1]
    %v71 = vlaneseq
    %v72 = vshrl.u32 %v71, 7
    %v73 = vsub.s32 0, %v72
    %v74 = vrot.slane %v69, %v73
    %vm76 = vcmask 261120
    %v78 = vsel %vm76, %v33, 0
    %v81 = vsel %vm76, %v34, 0
    %v84 = vsel %vm76, %v35, 0
    %v87 = vsel %vm76, %v36, 0
    %v90 = vsel %vm76, %v37, 0
    %v93 = vsel %vm76, %v38, 0
    %v96 = vsel %vm76, %v39, 0
    %v99 = vsel %vm76, %v40, 0
    %v102 = vsel %vm76, %v41, 0
    %v105 = vsel %vm76, %v42, 0
    %v108 = vsel %vm76, %v43, 0
    %v111 = vsel %vm76, %v44, 0
    %v114 = vsel %vm76, %v45, 0
    %v117 = vsel %vm76, %v46, 0
    %v120 = vsel %vm76, %v47, 0
    %v123 = vsel %vm76, %v48, 0
    %v126 = vsel %vm76, %v49, 0
    %v129 = vsel %vm76, %v50, 0
    %v132 = vsel %vm76, %v51, 0
    %v135 = vsel %vm76, %v52, 0
    %v138 = vsel %vm76, %v53, 0
    %v141 = vsel %vm76, %v54, 0
    %v144 = vsel %vm76, %v55, 0
    %v147 = vsel %vm76, %v56, 0
    %v150 = vsel %vm76, %v57, 0
    %v153 = vsel %vm76, %v58, 0
    %v156 = vsel %vm76, %v59, 0
    %v159 = vsel %vm76, %v60, 0
    %v162 = vsel %vm76, %v61, 0
    %v165 = vsel %vm76, %v62, 0
    %v168 = vsel %vm76, %v63, 0
    %v171 = vsel %vm76, %v64, 0
    %173 = vmatprep.subr.mxu0 0.0
    %174 = vmatpush1.msra.mxu0 %v65
    %175 = vmatprep.subr.mxu0 0.0
    %176 = vmatpush1.msra.mxu0 %v66
    %177 = vmatprep.subr.mxu0 0.0
    %178 = vmatpush1.msra.mxu0 %v67
    %179 = vmatprep.subr.mxu0 0.0
    %180 = vmatpush1.msra.mxu0 %v68
    %181 = vmatprep.subr.mxu0 0.0
    %182 = vmatpush1.msra.mxu0 0.0
    %183 = vmatprep.subr.mxu0 0.0
    %184 = vmatpush1.msra.mxu0 0.0
    %185 = vmatprep.subr.mxu0 0.0
    %186 = vmatpush1.msra.mxu0 0.0
    %187 = vmatprep.subr.mxu0 0.0
    %188 = vmatpush1.msra.mxu0 0.0
    %189 = vmatprep.subr.mxu0 0.0
    %190 = vmatpush1.msra.mxu0 0.0
    %191 = vmatprep.subr.mxu0 0.0
    %192 = vmatpush1.msra.mxu0 0.0
    %193 = vmatprep.subr.mxu0 0.0
    %194 = vmatpush1.msra.mxu0 0.0
    %195 = vmatprep.subr.mxu0 0.0
    %196 = vmatpush1.msra.mxu0 0.0
    %197 = vmatprep.subr.mxu0 0.0
    %198 = vmatpush1.msra.mxu0 0.0
    %199 = vmatprep.subr.mxu0 0.0
    %200 = vmatpush1.msra.mxu0 0.0
    %201 = vmatprep.subr.mxu0 0.0
    %202 = vmatpush1.msra.mxu0 0.0
    %203 = vmatprep.subr.mxu0 0.0
    %204 = vmatpush1.msra.mxu0 0.0
    %205 = vmatprep.subr.mxu0 0.0
    %206 = vmatpush1.msra.mxu0 0.0
    %207 = vmatprep.subr.mxu0 0.0
    %208 = vmatpush1.msra.mxu0 0.0
    %209 = vmatprep.subr.mxu0 0.0
    %210 = vmatpush1.msra.mxu0 0.0
    %211 = vmatprep.subr.mxu0 0.0
    %212 = vmatpush1.msra.mxu0 0.0
    %213 = vmatprep.subr.mxu0 0.0
    %214 = vmatpush1.msra.mxu0 0.0
    %215 = vmatprep.subr.mxu0 0.0
    %216 = vmatpush1.msra.mxu0 0.0
    %217 = vmatprep.subr.mxu0 0.0
    %218 = vmatpush1.msra.mxu0 0.0
    %219 = vmatprep.subr.mxu0 0.0
    %220 = vmatpush1.msra.mxu0 0.0
    %221 = vmatprep.subr.mxu0 0.0
    %222 = vmatpush1.msra.mxu0 0.0
    %223 = vmatprep.subr.mxu0 0.0
    %224 = vmatpush1.msra.mxu0 0.0
    %225 = vmatprep.subr.mxu0 0.0
    %226 = vmatpush1.msra.mxu0 0.0
    %227 = vmatprep.subr.mxu0 0.0
    %228 = vmatpush1.msra.mxu0 0.0
    %229 = vmatprep.subr.mxu0 0.0
    %230 = vmatpush1.msra.mxu0 0.0
    %231 = vmatprep.subr.mxu0 0.0
    %232 = vmatpush1.msra.mxu0 0.0
    %233 = vmatprep.subr.mxu0 0.0
    %234 = vmatpush1.msra.mxu0 0.0
    %235 = vmatprep.subr.mxu0 0.0
    %236 = vmatpush1.msra.mxu0 0.0
    %237 = vmatprep.mubr.f32.mxu0 0.0
    %238 = vmatmul.mubr.f32.gmra.mrb[0].mxu0 %v78
    %v239 = vpop.f32.mrb[0].mxu0
    %v240 = vadd.f32 %v74, %v239
    %v241 = vpop.f32.mrb[0].mxu0
    %242 = vmatprep.mubr.f32.mxu0 0.0
    %243 = vmatmul.mubr.f32.gmra.mrb[0].mxu0 %v81
    %v244 = vpop.f32.mrb[0].mxu0
    %v245 = vadd.f32 %v74, %v244
    %v246 = vpop.f32.mrb[0].mxu0
    %247 = vmatprep.mubr.f32.mxu0 0.0
    %248 = vmatmul.mubr.f32.gmra.mrb[0].mxu0 %v84
    %v249 = vpop.f32.mrb[0].mxu0
    %v250 = vadd.f32 %v74, %v249
    %v251 = vpop.f32.mrb[0].mxu0
    %252 = vmatprep.mubr.f32.mxu0 0.0
    %253 = vmatmul.mubr.f32.gmra.mrb[0].mxu0 %v87
    %v254 = vpop.f32.mrb[0].mxu0
    %v255 = vadd.f32 %v74, %v254
    %v256 = vpop.f32.mrb[0].mxu0
    %257 = vmatprep.mubr.f32.mxu0 0.0
    %258 = vmatmul.mubr.f32.gmra.mrb[0].mxu0 %v90
    %v259 = vpop.f32.mrb[0].mxu0
    %v260 = vadd.f32 %v74, %v259
    %v261 = vpop.f32.mrb[0].mxu0
    %262 = vmatprep.mubr.f32.mxu0 0.0
    %263 = vmatmul.mubr.f32.gmra.mrb[0].mxu0 %v93
    %v264 = vpop.f32.mrb[0].mxu0
    %v265 = vadd.f32 %v74, %v264
    %v266 = vpop.f32.mrb[0].mxu0
    %267 = vmatprep.mubr.f32.mxu0 0.0
    %268 = vmatmul.mubr.f32.gmra.mrb[0].mxu0 %v96
    %v269 = vpop.f32.mrb[0].mxu0
    %v270 = vadd.f32 %v74, %v269
    %v271 = vpop.f32.mrb[0].mxu0
    %272 = vmatprep.mubr.f32.mxu0 0.0
    %273 = vmatmul.mubr.f32.gmra.mrb[0].mxu0 %v99
    %v274 = vpop.f32.mrb[0].mxu0
    %v275 = vadd.f32 %v74, %v274
    %v276 = vpop.f32.mrb[0].mxu0
    %277 = vmatprep.mubr.f32.mxu0 0.0
    %278 = vmatmul.mubr.f32.gmra.mrb[0].mxu0 %v102
    %v279 = vpop.f32.mrb[0].mxu0
    %v280 = vadd.f32 %v74, %v279
    %v281 = vpop.f32.mrb[0].mxu0
    %282 = vmatprep.mubr.f32.mxu0 0.0
    %283 = vmatmul.mubr.f32.gmra.mrb[0].mxu0 %v105
    %v284 = vpop.f32.mrb[0].mxu0
    %v285 = vadd.f32 %v74, %v284
    %v286 = vpop.f32.mrb[0].mxu0
    %287 = vmatprep.mubr.f32.mxu0 0.0
    %288 = vmatmul.mubr.f32.gmra.mrb[0].mxu0 %v108
    %v289 = vpop.f32.mrb[0].mxu0
    %v290 = vadd.f32 %v74, %v289
    %v291 = vpop.f32.mrb[0].mxu0
    %292 = vmatprep.mubr.f32.mxu0 0.0
    %293 = vmatmul.mubr.f32.gmra.mrb[0].mxu0 %v111
    %v294 = vpop.f32.mrb[0].mxu0
    %v295 = vadd.f32 %v74, %v294
    %v296 = vpop.f32.mrb[0].mxu0
    %297 = vmatprep.mubr.f32.mxu0 0.0
    %298 = vmatmul.mubr.f32.gmra.mrb[0].mxu0 %v114
    %v299 = vpop.f32.mrb[0].mxu0
    %v300 = vadd.f32 %v74, %v299
    %v301 = vpop.f32.mrb[0].mxu0
    %302 = vmatprep.mubr.f32.mxu0 0.0
    %303 = vmatmul.mubr.f32.gmra.mrb[0].mxu0 %v117
    %v304 = vpop.f32.mrb[0].mxu0
    %v305 = vadd.f32 %v74, %v304
    %v306 = vpop.f32.mrb[0].mxu0
    %307 = vmatprep.mubr.f32.mxu0 0.0
    %308 = vmatmul.mubr.f32.gmra.mrb[0].mxu0 %v120
    %v309 = vpop.f32.mrb[0].mxu0
    %v310 = vadd.f32 %v74, %v309
    %v311 = vpop.f32.mrb[0].mxu0
    %312 = vmatprep.mubr.f32.mxu0 0.0
    %313 = vmatmul.mubr.f32.gmra.mrb[0].mxu0 %v123
    %v314 = vpop.f32.mrb[0].mxu0
    %v315 = vadd.f32 %v74, %v314
    %v316 = vpop.f32.mrb[0].mxu0
    %317 = vmatprep.mubr.f32.mxu0 0.0
    %318 = vmatmul.mubr.f32.gmra.mrb[0].mxu0 %v126
    %v319 = vpop.f32.mrb[0].mxu0
    %v320 = vadd.f32 %v74, %v319
    %v321 = vpop.f32.mrb[0].mxu0
    %322 = vmatprep.mubr.f32.mxu0 0.0
    %323 = vmatmul.mubr.f32.gmra.mrb[0].mxu0 %v129
    %v324 = vpop.f32.mrb[0].mxu0
    %v325 = vadd.f32 %v74, %v324
    %v326 = vpop.f32.mrb[0].mxu0
    %327 = vmatprep.mubr.f32.mxu0 0.0
    %328 = vmatmul.mubr.f32.gmra.mrb[0].mxu0 %v132
    %v329 = vpop.f32.mrb[0].mxu0
    %v330 = vadd.f32 %v74, %v329
    %v331 = vpop.f32.mrb[0].mxu0
    %332 = vmatprep.mubr.f32.mxu0 0.0
    %333 = vmatmul.mubr.f32.gmra.mrb[0].mxu0 %v135
    %v334 = vpop.f32.mrb[0].mxu0
    %v335 = vadd.f32 %v74, %v334
    %v336 = vpop.f32.mrb[0].mxu0
    %337 = vmatprep.mubr.f32.mxu0 0.0
    %338 = vmatmul.mubr.f32.gmra.mrb[0].mxu0 %v138
    %v339 = vpop.f32.mrb[0].mxu0
    %v340 = vadd.f32 %v74, %v339
    %v341 = vpop.f32.mrb[0].mxu0
    %342 = vmatprep.mubr.f32.mxu0 0.0
    %343 = vmatmul.mubr.f32.gmra.mrb[0].mxu0 %v141
    %v344 = vpop.f32.mrb[0].mxu0
    %v345 = vadd.f32 %v74, %v344
    %v346 = vpop.f32.mrb[0].mxu0
    %347 = vmatprep.mubr.f32.mxu0 0.0
    %348 = vmatmul.mubr.f32.gmra.mrb[0].mxu0 %v144
    %v349 = vpop.f32.mrb[0].mxu0
    %v350 = vadd.f32 %v74, %v349
    %v351 = vpop.f32.mrb[0].mxu0
    %352 = vmatprep.mubr.f32.mxu0 0.0
    %353 = vmatmul.mubr.f32.gmra.mrb[0].mxu0 %v147
    %v354 = vpop.f32.mrb[0].mxu0
    %v355 = vadd.f32 %v74, %v354
    %v356 = vpop.f32.mrb[0].mxu0
    %357 = vmatprep.mubr.f32.mxu0 0.0
    %358 = vmatmul.mubr.f32.gmra.mrb[0].mxu0 %v150
    %v359 = vpop.f32.mrb[0].mxu0
    %v360 = vadd.f32 %v74, %v359
    %v361 = vpop.f32.mrb[0].mxu0
    %362 = vmatprep.mubr.f32.mxu0 0.0
    %363 = vmatmul.mubr.f32.gmra.mrb[0].mxu0 %v153
    %v364 = vpop.f32.mrb[0].mxu0
    %v365 = vadd.f32 %v74, %v364
    %v366 = vpop.f32.mrb[0].mxu0
    %367 = vmatprep.mubr.f32.mxu0 0.0
    %368 = vmatmul.mubr.f32.gmra.mrb[0].mxu0 %v156
    %v369 = vpop.f32.mrb[0].mxu0
    %v370 = vadd.f32 %v74, %v369
    %v371 = vpop.f32.mrb[0].mxu0
    %372 = vmatprep.mubr.f32.mxu0 0.0
    %373 = vmatmul.mubr.f32.gmra.mrb[0].mxu0 %v159
    %v374 = vpop.f32.mrb[0].mxu0
    %v375 = vadd.f32 %v74, %v374
    %v376 = vpop.f32.mrb[0].mxu0
    %377 = vmatprep.mubr.f32.mxu0 0.0
    %378 = vmatmul.mubr.f32.gmra.mrb[0].mxu0 %v162
    %v379 = vpop.f32.mrb[0].mxu0
    %v380 = vadd.f32 %v74, %v379
    %v381 = vpop.f32.mrb[0].mxu0
    %382 = vmatprep.mubr.f32.mxu0 0.0
    %383 = vmatmul.mubr.f32.gmra.mrb[0].mxu0 %v165
    %v384 = vpop.f32.mrb[0].mxu0
    %v385 = vadd.f32 %v74, %v384
    %v386 = vpop.f32.mrb[0].mxu0
    %387 = vmatprep.mubr.f32.mxu0 0.0
    %388 = vmatmul.mubr.f32.gmra.mrb[0].mxu0 %v168
    %v389 = vpop.f32.mrb[0].mxu0
    %v390 = vadd.f32 %v74, %v389
    %v391 = vpop.f32.mrb[0].mxu0
    %392 = vmatprep.mubr.f32.mxu0 0.0
    %393 = vmatmul.mubr.f32.gmra.mrb[0].mxu0 %v171
    %v394 = vpop.f32.mrb[0].mxu0
    %v395 = vadd.f32 %v74, %v394
    %v396 = vpop.f32.mrb[0].mxu0
    %397 = vdwg.mxu0
    %v398 = vld [vmem:[%s3] sm:$0x1]
    %v399 = vmin.f32 %v240, 0.0
    %v400 = vmin.f32 %v245, 0.0
    %v401 = vmin.f32 %v250, 0.0
    %v402 = vmin.f32 %v255, 0.0
    %v403 = vmin.f32 %v260, 0.0
    %v404 = vmin.f32 %v265, 0.0
    %v405 = vmin.f32 %v270, 0.0
    %v406 = vmin.f32 %v275, 0.0
    %v407 = vmin.f32 %v280, 0.0
    %v408 = vmin.f32 %v285, 0.0
    %v409 = vmin.f32 %v290, 0.0
    %v410 = vmin.f32 %v295, 0.0
    %v411 = vmin.f32 %v300, 0.0
    %v412 = vmin.f32 %v305, 0.0
    %v413 = vmin.f32 %v310, 0.0
    %v414 = vmin.f32 %v315, 0.0
    %v415 = vmin.f32 %v320, 0.0
    %v416 = vmin.f32 %v325, 0.0
    %v417 = vmin.f32 %v330, 0.0
    %v418 = vmin.f32 %v335, 0.0
    %v419 = vmin.f32 %v340, 0.0
    %v420 = vmin.f32 %v345, 0.0
    %v421 = vmin.f32 %v350, 0.0
    %v422 = vmin.f32 %v355, 0.0
    %v423 = vmin.f32 %v360, 0.0
    %v424 = vmin.f32 %v365, 0.0
    %v425 = vmin.f32 %v370, 0.0
    %v426 = vmin.f32 %v375, 0.0
    %v427 = vmin.f32 %v380, 0.0
    %v428 = vmin.f32 %v385, 0.0
    %v429 = vmin.f32 %v390, 0.0
    %v430 = vmin.f32 %v395, 0.0
    %v432 = vlaneseq
    %v433 = vshrl.u32 %v432, 7
    %v434 = vsub.s32 0, %v433
    %v435 = vrot.slane %v398, %v434
    %v437 = vmul.f32 %v435, %v399
    %v438 = vmul.f32 %v435, %v400
    %v439 = vmul.f32 %v435, %v401
    %v440 = vmul.f32 %v435, %v402
    %v441 = vmul.f32 %v435, %v403
    %v442 = vmul.f32 %v435, %v404
    %v443 = vmul.f32 %v435, %v405
    %v444 = vmul.f32 %v435, %v406
    %v445 = vmul.f32 %v435, %v407
    %v446 = vmul.f32 %v435, %v408
    %v447 = vmul.f32 %v435, %v409
    %v448 = vmul.f32 %v435, %v410
    %v449 = vmul.f32 %v435, %v411
    %v450 = vmul.f32 %v435, %v412
    %v451 = vmul.f32 %v435, %v413
    %v452 = vmul.f32 %v435, %v414
    %v453 = vmul.f32 %v435, %v415
    %v454 = vmul.f32 %v435, %v416
    %v455 = vmul.f32 %v435, %v417
    %v456 = vmul.f32 %v435, %v418
    %v457 = vmul.f32 %v435, %v419
    %v458 = vmul.f32 %v435, %v420
    %v459 = vmul.f32 %v435, %v421
    %v460 = vmul.f32 %v435, %v422
    %v461 = vmul.f32 %v435, %v423
    %v462 = vmul.f32 %v435, %v424
    %v463 = vmul.f32 %v435, %v425
    %v464 = vmul.f32 %v435, %v426
    %v465 = vmul.f32 %v435, %v427
    %v466 = vmul.f32 %v435, %v428
    %v467 = vmul.f32 %v435, %v429
    %v468 = vmul.f32 %v435, %v430
    %v469 = vsub.f32 %v240, %v437
    %v470 = vsub.f32 %v245, %v438
    %v471 = vsub.f32 %v250, %v439
    %v472 = vsub.f32 %v255, %v440
    %v473 = vsub.f32 %v260, %v441
    %v474 = vsub.f32 %v265, %v442
    %v475 = vsub.f32 %v270, %v443
    %v476 = vsub.f32 %v275, %v444
    %v477 = vsub.f32 %v280, %v445
    %v478 = vsub.f32 %v285, %v446
    %v479 = vsub.f32 %v290, %v447
    %v480 = vsub.f32 %v295, %v448
    %v481 = vsub.f32 %v300, %v449
    %v482 = vsub.f32 %v305, %v450
    %v483 = vsub.f32 %v310, %v451
    %v484 = vsub.f32 %v315, %v452
    %v485 = vsub.f32 %v320, %v453
    %v486 = vsub.f32 %v325, %v454
    %v487 = vsub.f32 %v330, %v455
    %v488 = vsub.f32 %v335, %v456
    %v489 = vsub.f32 %v340, %v457
    %v490 = vsub.f32 %v345, %v458
    %v491 = vsub.f32 %v350, %v459
    %v492 = vsub.f32 %v355, %v460
    %v493 = vsub.f32 %v360, %v461
    %v494 = vsub.f32 %v365, %v462
    %v495 = vsub.f32 %v370, %v463
    %v496 = vsub.f32 %v375, %v464
    %v497 = vsub.f32 %v380, %v465
    %v498 = vsub.f32 %v385, %v466
    %v499 = vsub.f32 %v390, %v467
    %v500 = vsub.f32 %v395, %v468
    %v501 = vld [vmem:[%s4] sm:$0xff]
    %v502 = vld [vmem:[%s4 + $0x8] sm:$0xff]
    %v503 = vld [vmem:[%s4 + $0x10] sm:$0xff]
    %v504 = vld [vmem:[%s4 + $0x18] sm:$0xff]
    %v505 = vld [vmem:[%s4 + $0x20] sm:$0xff]
    %v506 = vld [vmem:[%s4 + $0x28] sm:$0xff]
    %v507 = vld [vmem:[%s4 + $0x30] sm:$0xff]
    %v508 = vld [vmem:[%s4 + $0x38] sm:$0xff]
    %v509 = vld [vmem:[%s5] sm:$0x1]
    %v511 = vlaneseq
    %v512 = vshrl.u32 %v511, 7
    %v513 = vsub.s32 0, %v512
    %v514 = vrot.slane %v509, %v513
    %vm516 = vcmask 523264
    %v518 = vsel %vm516, %v469, 0
    %v521 = vsel %vm516, %v470, 0
    %v524 = vsel %vm516, %v471, 0
    %v527 = vsel %vm516, %v472, 0
    %v530 = vsel %vm516, %v473, 0
    %v533 = vsel %vm516, %v474, 0
    %v536 = vsel %vm516, %v475, 0
    %v539 = vsel %vm516, %v476, 0
    %v542 = vsel %vm516, %v477, 0
    %v545 = vsel %vm516, %v478, 0
    %v548 = vsel %vm516, %v479, 0
    %v551 = vsel %vm516, %v480, 0
    %v554 = vsel %vm516, %v481, 0
    %v557 = vsel %vm516, %v482, 0
    %v560 = vsel %vm516, %v483, 0
    %v563 = vsel %vm516, %v484, 0
    %v566 = vsel %vm516, %v485, 0
    %v569 = vsel %vm516, %v486, 0
    %v572 = vsel %vm516, %v487, 0
    %v575 = vsel %vm516, %v488, 0
    %v578 = vsel %vm516, %v489, 0
    %v581 = vsel %vm516, %v490, 0
    %v584 = vsel %vm516, %v491, 0
    %v587 = vsel %vm516, %v492, 0
    %v590 = vsel %vm516, %v493, 0
    %v593 = vsel %vm516, %v494, 0
    %v596 = vsel %vm516, %v495, 0
    %v599 = vsel %vm516, %v496, 0
    %v602 = vsel %vm516, %v497, 0
    %v605 = vsel %vm516, %v498, 0
    %v608 = vsel %vm516, %v499, 0
    %v611 = vsel %vm516, %v500, 0
    %613 = vmatprep.subr.mxu0 0.0
    %614 = vmatpush1.msra.mxu0 %v501
    %615 = vmatprep.subr.mxu0 0.0
    %616 = vmatpush1.msra.mxu0 %v502
    %617 = vmatprep.subr.mxu0 0.0
    %618 = vmatpush1.msra.mxu0 %v503
    %619 = vmatprep.subr.mxu0 0.0
    %620 = vmatpush1.msra.mxu0 %v504
    %621 = vmatprep.subr.mxu0 0.0
    %622 = vmatpush1.msra.mxu0 %v505
    %623 = vmatprep.subr.mxu0 0.0
    %624 = vmatpush1.msra.mxu0 %v506
    %625 = vmatprep.subr.mxu0 0.0
    %626 = vmatpush1.msra.mxu0 %v507
    %627 = vmatprep.subr.mxu0 0.0
    %628 = vmatpush1.msra.mxu0 %v508
    %629 = vmatprep.subr.mxu0 0.0
    %630 = vmatpush1.msra.mxu0 0.0
    %631 = vmatprep.subr.mxu0 0.0
    %632 = vmatpush1.msra.mxu0 0.0
    %633 = vmatprep.subr.mxu0 0.0
    %634 = vmatpush1.msra.mxu0 0.0
    %635 = vmatprep.subr.mxu0 0.0
    %636 = vmatpush1.msra.mxu0 0.0
    %637 = vmatprep.subr.mxu0 0.0
    %638 = vmatpush1.msra.mxu0 0.0
    %639 = vmatprep.subr.mxu0 0.0
    %640 = vmatpush1.msra.mxu0 0.0
    %641 = vmatprep.subr.mxu0 0.0
    %642 = vmatpush1.msra.mxu0 0.0
    %643 = vmatprep.subr.mxu0 0.0
    %644 = vmatpush1.msra.mxu0 0.0
    %645 = vmatprep.subr.mxu0 0.0
    %646 = vmatpush1.msra.mxu0 0.0
    %647 = vmatprep.subr.mxu0 0.0
    %648 = vmatpush1.msra.mxu0 0.0
    %649 = vmatprep.subr.mxu0 0.0
    %650 = vmatpush1.msra.mxu0 0.0
    %651 = vmatprep.subr.mxu0 0.0
    %652 = vmatpush1.msra.mxu0 0.0
    %653 = vmatprep.subr.mxu0 0.0
    %654 = vmatpush1.msra.mxu0 0.0
    %655 = vmatprep.subr.mxu0 0.0
    %656 = vmatpush1.msra.mxu0 0.0
    %657 = vmatprep.subr.mxu0 0.0
    %658 = vmatpush1.msra.mxu0 0.0
    %659 = vmatprep.subr.mxu0 0.0
    %660 = vmatpush1.msra.mxu0 0.0
    %661 = vmatprep.subr.mxu0 0.0
    %662 = vmatpush1.msra.mxu0 0.0
    %663 = vmatprep.subr.mxu0 0.0
    %664 = vmatpush1.msra.mxu0 0.0
    %665 = vmatprep.subr.mxu0 0.0
    %666 = vmatpush1.msra.mxu0 0.0
    %667 = vmatprep.subr.mxu0 0.0
    %668 = vmatpush1.msra.mxu0 0.0
    %669 = vmatprep.subr.mxu0 0.0
    %670 = vmatpush1.msra.mxu0 0.0
    %671 = vmatprep.subr.mxu0 0.0
    %672 = vmatpush1.msra.mxu0 0.0
    %673 = vmatprep.subr.mxu0 0.0
    %674 = vmatpush1.msra.mxu0 0.0
    %675 = vmatprep.subr.mxu0 0.0
    %676 = vmatpush1.msra.mxu0 0.0
    %677 = vmatprep.mubr.f32.mxu0 0.0
    %678 = vmatmul.mubr.f32.gmra.mrb[0].mxu0 %v518
    %v679 = vpop.f32.mrb[0].mxu0
    %v680 = vadd.f32 %v514, %v679
    %v681 = vpop.f32.mrb[0].mxu0
    %682 = vmatprep.mubr.f32.mxu0 0.0
    %683 = vmatmul.mubr.f32.gmra.mrb[0].mxu0 %v521
    %v684 = vpop.f32.mrb[0].mxu0
    %v685 = vadd.f32 %v514, %v684
    %v686 = vpop.f32.mrb[0].mxu0
    %687 = vmatprep.mubr.f32.mxu0 0.0
    %688 = vmatmul.mubr.f32.gmra.mrb[0].mxu0 %v524
    %v689 = vpop.f32.mrb[0].mxu0
    %v690 = vadd.f32 %v514, %v689
    %v691 = vpop.f32.mrb[0].mxu0
    %692 = vmatprep.mubr.f32.mxu0 0.0
    %693 = vmatmul.mubr.f32.gmra.mrb[0].mxu0 %v527
    %v694 = vpop.f32.mrb[0].mxu0
    %v695 = vadd.f32 %v514, %v694
    %v696 = vpop.f32.mrb[0].mxu0
    %697 = vmatprep.mubr.f32.mxu0 0.0
    %698 = vmatmul.mubr.f32.gmra.mrb[0].mxu0 %v530
    %v699 = vpop.f32.mrb[0].mxu0
    %v700 = vadd.f32 %v514, %v699
    %v701 = vpop.f32.mrb[0].mxu0
    %702 = vmatprep.mubr.f32.mxu0 0.0
    %703 = vmatmul.mubr.f32.gmra.mrb[0].mxu0 %v533
    %v704 = vpop.f32.mrb[0].mxu0
    %v705 = vadd.f32 %v514, %v704
    %v706 = vpop.f32.mrb[0].mxu0
    %707 = vmatprep.mubr.f32.mxu0 0.0
    %708 = vmatmul.mubr.f32.gmra.mrb[0].mxu0 %v536
    %v709 = vpop.f32.mrb[0].mxu0
    %v710 = vadd.f32 %v514, %v709
    %v711 = vpop.f32.mrb[0].mxu0
    %712 = vmatprep.mubr.f32.mxu0 0.0
    %713 = vmatmul.mubr.f32.gmra.mrb[0].mxu0 %v539
    %v714 = vpop.f32.mrb[0].mxu0
    %v715 = vadd.f32 %v514, %v714
    %v716 = vpop.f32.mrb[0].mxu0
    %717 = vmatprep.mubr.f32.mxu0 0.0
    %718 = vmatmul.mubr.f32.gmra.mrb[0].mxu0 %v542
    %v719 = vpop.f32.mrb[0].mxu0
    %v720 = vadd.f32 %v514, %v719
    %v721 = vpop.f32.mrb[0].mxu0
    %722 = vmatprep.mubr.f32.mxu0 0.0
    %723 = vmatmul.mubr.f32.gmra.mrb[0].mxu0 %v545
    %v724 = vpop.f32.mrb[0].mxu0
    %v725 = vadd.f32 %v514, %v724
    %v726 = vpop.f32.mrb[0].mxu0
    %727 = vmatprep.mubr.f32.mxu0 0.0
    %728 = vmatmul.mubr.f32.gmra.mrb[0].mxu0 %v548
    %v729 = vpop.f32.mrb[0].mxu0
    %v730 = vadd.f32 %v514, %v729
    %v731 = vpop.f32.mrb[0].mxu0
    %732 = vmatprep.mubr.f32.mxu0 0.0
    %733 = vmatmul.mubr.f32.gmra.mrb[0].mxu0 %v551
    %v734 = vpop.f32.mrb[0].mxu0
    %v735 = vadd.f32 %v514, %v734
    %v736 = vpop.f32.mrb[0].mxu0
    %737 = vmatprep.mubr.f32.mxu0 0.0
    %738 = vmatmul.mubr.f32.gmra.mrb[0].mxu0 %v554
    %v739 = vpop.f32.mrb[0].mxu0
    %v740 = vadd.f32 %v514, %v739
    %v741 = vpop.f32.mrb[0].mxu0
    %742 = vmatprep.mubr.f32.mxu0 0.0
    %743 = vmatmul.mubr.f32.gmra.mrb[0].mxu0 %v557
    %v744 = vpop.f32.mrb[0].mxu0
    %v745 = vadd.f32 %v514, %v744
    %v746 = vpop.f32.mrb[0].mxu0
    %747 = vmatprep.mubr.f32.mxu0 0.0
    %748 = vmatmul.mubr.f32.gmra.mrb[0].mxu0 %v560
    %v749 = vpop.f32.mrb[0].mxu0
    %v750 = vadd.f32 %v514, %v749
    %v751 = vpop.f32.mrb[0].mxu0
    %752 = vmatprep.mubr.f32.mxu0 0.0
    %753 = vmatmul.mubr.f32.gmra.mrb[0].mxu0 %v563
    %v754 = vpop.f32.mrb[0].mxu0
    %v755 = vadd.f32 %v514, %v754
    %v756 = vpop.f32.mrb[0].mxu0
    %757 = vmatprep.mubr.f32.mxu0 0.0
    %758 = vmatmul.mubr.f32.gmra.mrb[0].mxu0 %v566
    %v759 = vpop.f32.mrb[0].mxu0
    %v760 = vadd.f32 %v514, %v759
    %v761 = vpop.f32.mrb[0].mxu0
    %762 = vmatprep.mubr.f32.mxu0 0.0
    %763 = vmatmul.mubr.f32.gmra.mrb[0].mxu0 %v569
    %v764 = vpop.f32.mrb[0].mxu0
    %v765 = vadd.f32 %v514, %v764
    %v766 = vpop.f32.mrb[0].mxu0
    %767 = vmatprep.mubr.f32.mxu0 0.0
    %768 = vmatmul.mubr.f32.gmra.mrb[0].mxu0 %v572
    %v769 = vpop.f32.mrb[0].mxu0
    %v770 = vadd.f32 %v514, %v769
    %v771 = vpop.f32.mrb[0].mxu0
    %772 = vmatprep.mubr.f32.mxu0 0.0
    %773 = vmatmul.mubr.f32.gmra.mrb[0].mxu0 %v575
    %v774 = vpop.f32.mrb[0].mxu0
    %v775 = vadd.f32 %v514, %v774
    %v776 = vpop.f32.mrb[0].mxu0
    %777 = vmatprep.mubr.f32.mxu0 0.0
    %778 = vmatmul.mubr.f32.gmra.mrb[0].mxu0 %v578
    %v779 = vpop.f32.mrb[0].mxu0
    %v780 = vadd.f32 %v514, %v779
    %v781 = vpop.f32.mrb[0].mxu0
    %782 = vmatprep.mubr.f32.mxu0 0.0
    %783 = vmatmul.mubr.f32.gmra.mrb[0].mxu0 %v581
    %v784 = vpop.f32.mrb[0].mxu0
    %v785 = vadd.f32 %v514, %v784
    %v786 = vpop.f32.mrb[0].mxu0
    %787 = vmatprep.mubr.f32.mxu0 0.0
    %788 = vmatmul.mubr.f32.gmra.mrb[0].mxu0 %v584
    %v789 = vpop.f32.mrb[0].mxu0
    %v790 = vadd.f32 %v514, %v789
    %v791 = vpop.f32.mrb[0].mxu0
    %792 = vmatprep.mubr.f32.mxu0 0.0
    %793 = vmatmul.mubr.f32.gmra.mrb[0].mxu0 %v587
    %v794 = vpop.f32.mrb[0].mxu0
    %v795 = vadd.f32 %v514, %v794
    %v796 = vpop.f32.mrb[0].mxu0
    %797 = vmatprep.mubr.f32.mxu0 0.0
    %798 = vmatmul.mubr.f32.gmra.mrb[0].mxu0 %v590
    %v799 = vpop.f32.mrb[0].mxu0
    %v800 = vadd.f32 %v514, %v799
    %v801 = vpop.f32.mrb[0].mxu0
    %802 = vmatprep.mubr.f32.mxu0 0.0
    %803 = vmatmul.mubr.f32.gmra.mrb[0].mxu0 %v593
    %v804 = vpop.f32.mrb[0].mxu0
    %v805 = vadd.f32 %v514, %v804
    %v806 = vpop.f32.mrb[0].mxu0
    %807 = vmatprep.mubr.f32.mxu0 0.0
    %808 = vmatmul.mubr.f32.gmra.mrb[0].mxu0 %v596
    %v809 = vpop.f32.mrb[0].mxu0
    %v810 = vadd.f32 %v514, %v809
    %v811 = vpop.f32.mrb[0].mxu0
    %812 = vmatprep.mubr.f32.mxu0 0.0
    %813 = vmatmul.mubr.f32.gmra.mrb[0].mxu0 %v599
    %v814 = vpop.f32.mrb[0].mxu0
    %v815 = vadd.f32 %v514, %v814
    %v816 = vpop.f32.mrb[0].mxu0
    %817 = vmatprep.mubr.f32.mxu0 0.0
    %818 = vmatmul.mubr.f32.gmra.mrb[0].mxu0 %v602
    %v819 = vpop.f32.mrb[0].mxu0
    %v820 = vadd.f32 %v514, %v819
    %v821 = vpop.f32.mrb[0].mxu0
    %822 = vmatprep.mubr.f32.mxu0 0.0
    %823 = vmatmul.mubr.f32.gmra.mrb[0].mxu0 %v605
    %v824 = vpop.f32.mrb[0].mxu0
    %v825 = vadd.f32 %v514, %v824
    %v826 = vpop.f32.mrb[0].mxu0
    %827 = vmatprep.mubr.f32.mxu0 0.0
    %828 = vmatmul.mubr.f32.gmra.mrb[0].mxu0 %v608
    %v829 = vpop.f32.mrb[0].mxu0
    %v830 = vadd.f32 %v514, %v829
    %v831 = vpop.f32.mrb[0].mxu0
    %832 = vmatprep.mubr.f32.mxu0 0.0
    %833 = vmatmul.mubr.f32.gmra.mrb[0].mxu0 %v611
    %v834 = vpop.f32.mrb[0].mxu0
    %v835 = vadd.f32 %v514, %v834
    %v836 = vpop.f32.mrb[0].mxu0
    %837 = vdwg.mxu0
    %v838 = vmax.f32 %v680, 0.0
    %v839 = vmax.f32 %v685, 0.0
    %v840 = vmax.f32 %v690, 0.0
    %v841 = vmax.f32 %v695, 0.0
    %v842 = vmax.f32 %v700, 0.0
    %v843 = vmax.f32 %v705, 0.0
    %v844 = vmax.f32 %v710, 0.0
    %v845 = vmax.f32 %v715, 0.0
    %v846 = vmax.f32 %v720, 0.0
    %v847 = vmax.f32 %v725, 0.0
    %v848 = vmax.f32 %v730, 0.0
    %v849 = vmax.f32 %v735, 0.0
    %v850 = vmax.f32 %v740, 0.0
    %v851 = vmax.f32 %v745, 0.0
    %v852 = vmax.f32 %v750, 0.0
    %v853 = vmax.f32 %v755, 0.0
    %v854 = vmax.f32 %v760, 0.0
    %v855 = vmax.f32 %v765, 0.0
    %v856 = vmax.f32 %v770, 0.0
    %v857 = vmax.f32 %v775, 0.0
    %v858 = vmax.f32 %v780, 0.0
    %v859 = vmax.f32 %v785, 0.0
    %v860 = vmax.f32 %v790, 0.0
    %v861 = vmax.f32 %v795, 0.0
    %v862 = vmax.f32 %v800, 0.0
    %v863 = vmax.f32 %v805, 0.0
    %v864 = vmax.f32 %v810, 0.0
    %v865 = vmax.f32 %v815, 0.0
    %v866 = vmax.f32 %v820, 0.0
    %v867 = vmax.f32 %v825, 0.0
    %v868 = vmax.f32 %v830, 0.0
    %v869 = vmax.f32 %v835, 0.0
    %v870 = vadd.f32 %v469, %v838
    %v871 = vadd.f32 %v470, %v839
    %v872 = vadd.f32 %v471, %v840
    %v873 = vadd.f32 %v472, %v841
    %v874 = vadd.f32 %v473, %v842
    %v875 = vadd.f32 %v474, %v843
    %v876 = vadd.f32 %v475, %v844
    %v877 = vadd.f32 %v476, %v845
    %v878 = vadd.f32 %v477, %v846
    %v879 = vadd.f32 %v478, %v847
    %v880 = vadd.f32 %v479, %v848
    %v881 = vadd.f32 %v480, %v849
    %v882 = vadd.f32 %v481, %v850
    %v883 = vadd.f32 %v482, %v851
    %v884 = vadd.f32 %v483, %v852
    %v885 = vadd.f32 %v484, %v853
    %v886 = vadd.f32 %v485, %v854
    %v887 = vadd.f32 %v486, %v855
    %v888 = vadd.f32 %v487, %v856
    %v889 = vadd.f32 %v488, %v857
    %v890 = vadd.f32 %v489, %v858
    %v891 = vadd.f32 %v490, %v859
    %v892 = vadd.f32 %v491, %v860
    %v893 = vadd.f32 %v492, %v861
    %v894 = vadd.f32 %v493, %v862
    %v895 = vadd.f32 %v494, %v863
    %v896 = vadd.f32 %v495, %v864
    %v897 = vadd.f32 %v496, %v865
    %v898 = vadd.f32 %v497, %v866
    %v899 = vadd.f32 %v498, %v867
    %v900 = vadd.f32 %v499, %v868
    %v901 = vadd.f32 %v500, %v869
    %s902 = scalar_lea.vmem %s4, 64
    %v903 = vld [vmem:[%s902] sm:$0xff]
    %v904 = vld [vmem:[%s902 + $0x8] sm:$0xff]
    %v905 = vld [vmem:[%s902 + $0x10] sm:$0xff]
    %v906 = vld [vmem:[%s902 + $0x18] sm:$0xff]
    %v907 = vld [vmem:[%s902 + $0x20] sm:$0xff]
    %v908 = vld [vmem:[%s902 + $0x28] sm:$0xff]
    %v909 = vld [vmem:[%s902 + $0x30] sm:$0xff]
    %v910 = vld [vmem:[%s902 + $0x38] sm:$0xff]
    %s911 = scalar_lea.vmem %s5, 1
    %v912 = vld [vmem:[%s911] sm:$0x1]
    %v914 = vlaneseq
    %v915 = vshrl.u32 %v914, 7
    %v916 = vsub.s32 0, %v915
    %v917 = vrot.slane %v912, %v916
    %v920 = vsel %vm516, %v870, 0
    %v923 = vsel %vm516, %v871, 0
    %v926 = vsel %vm516, %v872, 0
    %v929 = vsel %vm516, %v873, 0
    %v932 = vsel %vm516, %v874, 0
    %v935 = vsel %vm516, %v875, 0
    %v938 = vsel %vm516, %v876, 0
    %v941 = vsel %vm516, %v877, 0
    %v944 = vsel %vm516, %v878, 0
    %v947 = vsel %vm516, %v879, 0
    %v950 = vsel %vm516, %v880, 0
    %v953 = vsel %vm516, %v881, 0
    %v956 = vsel %vm516, %v882, 0
    %v959 = vsel %vm516, %v883, 0
    %v962 = vsel %vm516, %v884, 0
    %v965 = vsel %vm516, %v885, 0
    %v968 = vsel %vm516, %v886, 0
    %v971 = vsel %vm516, %v887, 0
    %v974 = vsel %vm516, %v888, 0
    %v977 = vsel %vm516, %v889, 0
    %v980 = vsel %vm516, %v890, 0
    %v983 = vsel %vm516, %v891, 0
    %v986 = vsel %vm516, %v892, 0
    %v989 = vsel %vm516, %v893, 0
    %v992 = vsel %vm516, %v894, 0
    %v995 = vsel %vm516, %v895, 0
    %v998 = vsel %vm516, %v896, 0
    %v1001 = vsel %vm516, %v897, 0
    %v1004 = vsel %vm516, %v898, 0
    %v1007 = vsel %vm516, %v899, 0
    %v1010 = vsel %vm516, %v900, 0
    %v1013 = vsel %vm516, %v901, 0
    %1015 = vmatprep.subr.mxu0 0.0
    %1016 = vmatpush1.msra.mxu0 %v903
    %1017 = vmatprep.subr.mxu0 0.0
    %1018 = vmatpush1.msra.mxu0 %v904
    %1019 = vmatprep.subr.mxu0 0.0
    %1020 = vmatpush1.msra.mxu0 %v905
    %1021 = vmatprep.subr.mxu0 0.0
    %1022 = vmatpush1.msra.mxu0 %v906
    %1023 = vmatprep.subr.mxu0 0.0
    %1024 = vmatpush1.msra.mxu0 %v907
    %1025 = vmatprep.subr.mxu0 0.0
    %1026 = vmatpush1.msra.mxu0 %v908
    %1027 = vmatprep.subr.mxu0 0.0
    %1028 = vmatpush1.msra.mxu0 %v909
    %1029 = vmatprep.subr.mxu0 0.0
    %1030 = vmatpush1.msra.mxu0 %v910
    %1031 = vmatprep.subr.mxu0 0.0
    %1032 = vmatpush1.msra.mxu0 0.0
    %1033 = vmatprep.subr.mxu0 0.0
    %1034 = vmatpush1.msra.mxu0 0.0
    %1035 = vmatprep.subr.mxu0 0.0
    %1036 = vmatpush1.msra.mxu0 0.0
    %1037 = vmatprep.subr.mxu0 0.0
    %1038 = vmatpush1.msra.mxu0 0.0
    %1039 = vmatprep.subr.mxu0 0.0
    %1040 = vmatpush1.msra.mxu0 0.0
    %1041 = vmatprep.subr.mxu0 0.0
    %1042 = vmatpush1.msra.mxu0 0.0
    %1043 = vmatprep.subr.mxu0 0.0
    %1044 = vmatpush1.msra.mxu0 0.0
    %1045 = vmatprep.subr.mxu0 0.0
    %1046 = vmatpush1.msra.mxu0 0.0
    %1047 = vmatprep.subr.mxu0 0.0
    %1048 = vmatpush1.msra.mxu0 0.0
    %1049 = vmatprep.subr.mxu0 0.0
    %1050 = vmatpush1.msra.mxu0 0.0
    %1051 = vmatprep.subr.mxu0 0.0
    %1052 = vmatpush1.msra.mxu0 0.0
    %1053 = vmatprep.subr.mxu0 0.0
    %1054 = vmatpush1.msra.mxu0 0.0
    %1055 = vmatprep.subr.mxu0 0.0
    %1056 = vmatpush1.msra.mxu0 0.0
    %1057 = vmatprep.subr.mxu0 0.0
    %1058 = vmatpush1.msra.mxu0 0.0
    %1059 = vmatprep.subr.mxu0 0.0
    %1060 = vmatpush1.msra.mxu0 0.0
    %1061 = vmatprep.subr.mxu0 0.0
    %1062 = vmatpush1.msra.mxu0 0.0
    %1063 = vmatprep.subr.mxu0 0.0
    %1064 = vmatpush1.msra.mxu0 0.0
    %1065 = vmatprep.subr.mxu0 0.0
    %1066 = vmatpush1.msra.mxu0 0.0
    %1067 = vmatprep.subr.mxu0 0.0
    %1068 = vmatpush1.msra.mxu0 0.0
    %1069 = vmatprep.subr.mxu0 0.0
    %1070 = vmatpush1.msra.mxu0 0.0
    %1071 = vmatprep.subr.mxu0 0.0
    %1072 = vmatpush1.msra.mxu0 0.0
    %1073 = vmatprep.subr.mxu0 0.0
    %1074 = vmatpush1.msra.mxu0 0.0
    %1075 = vmatprep.subr.mxu0 0.0
    %1076 = vmatpush1.msra.mxu0 0.0
    %1077 = vmatprep.subr.mxu0 0.0
    %1078 = vmatpush1.msra.mxu0 0.0
    %1079 = vmatprep.mubr.f32.mxu0 0.0
    %1080 = vmatmul.mubr.f32.gmra.mrb[0].mxu0 %v920
    %v1081 = vpop.f32.mrb[0].mxu0
    %v1082 = vadd.f32 %v917, %v1081
    %v1083 = vpop.f32.mrb[0].mxu0
    %1084 = vmatprep.mubr.f32.mxu0 0.0
    %1085 = vmatmul.mubr.f32.gmra.mrb[0].mxu0 %v923
    %v1086 = vpop.f32.mrb[0].mxu0
    %v1087 = vadd.f32 %v917, %v1086
    %v1088 = vpop.f32.mrb[0].mxu0
    %1089 = vmatprep.mubr.f32.mxu0 0.0
    %1090 = vmatmul.mubr.f32.gmra.mrb[0].mxu0 %v926
    %v1091 = vpop.f32.mrb[0].mxu0
    %v1092 = vadd.f32 %v917, %v1091
    %v1093 = vpop.f32.mrb[0].mxu0
    %1094 = vmatprep.mubr.f32.mxu0 0.0
    %1095 = vmatmul.mubr.f32.gmra.mrb[0].mxu0 %v929
    %v1096 = vpop.f32.mrb[0].mxu0
    %v1097 = vadd.f32 %v917, %v1096
    %v1098 = vpop.f32.mrb[0].mxu0
    %1099 = vmatprep.mubr.f32.mxu0 0.0
    %1100 = vmatmul.mubr.f32.gmra.mrb[0].mxu0 %v932
    %v1101 = vpop.f32.mrb[0].mxu0
    %v1102 = vadd.f32 %v917, %v1101
    %v1103 = vpop.f32.mrb[0].mxu0
    %1104 = vmatprep.mubr.f32.mxu0 0.0
    %1105 = vmatmul.mubr.f32.gmra.mrb[0].mxu0 %v935
    %v1106 = vpop.f32.mrb[0].mxu0
    %v1107 = vadd.f32 %v917, %v1106
    %v1108 = vpop.f32.mrb[0].mxu0
    %1109 = vmatprep.mubr.f32.mxu0 0.0
    %1110 = vmatmul.mubr.f32.gmra.mrb[0].mxu0 %v938
    %v1111 = vpop.f32.mrb[0].mxu0
    %v1112 = vadd.f32 %v917, %v1111
    %v1113 = vpop.f32.mrb[0].mxu0
    %1114 = vmatprep.mubr.f32.mxu0 0.0
    %1115 = vmatmul.mubr.f32.gmra.mrb[0].mxu0 %v941
    %v1116 = vpop.f32.mrb[0].mxu0
    %v1117 = vadd.f32 %v917, %v1116
    %v1118 = vpop.f32.mrb[0].mxu0
    %1119 = vmatprep.mubr.f32.mxu0 0.0
    %1120 = vmatmul.mubr.f32.gmra.mrb[0].mxu0 %v944
    %v1121 = vpop.f32.mrb[0].mxu0
    %v1122 = vadd.f32 %v917, %v1121
    %v1123 = vpop.f32.mrb[0].mxu0
    %1124 = vmatprep.mubr.f32.mxu0 0.0
    %1125 = vmatmul.mubr.f32.gmra.mrb[0].mxu0 %v947
    %v1126 = vpop.f32.mrb[0].mxu0
    %v1127 = vadd.f32 %v917, %v1126
    %v1128 = vpop.f32.mrb[0].mxu0
    %1129 = vmatprep.mubr.f32.mxu0 0.0
    %1130 = vmatmul.mubr.f32.gmra.mrb[0].mxu0 %v950
    %v1131 = vpop.f32.mrb[0].mxu0
    %v1132 = vadd.f32 %v917, %v1131
    %v1133 = vpop.f32.mrb[0].mxu0
    %1134 = vmatprep.mubr.f32.mxu0 0.0
    %1135 = vmatmul.mubr.f32.gmra.mrb[0].mxu0 %v953
    %v1136 = vpop.f32.mrb[0].mxu0
    %v1137 = vadd.f32 %v917, %v1136
    %v1138 = vpop.f32.mrb[0].mxu0
    %1139 = vmatprep.mubr.f32.mxu0 0.0
    %1140 = vmatmul.mubr.f32.gmra.mrb[0].mxu0 %v956
    %v1141 = vpop.f32.mrb[0].mxu0
    %v1142 = vadd.f32 %v917, %v1141
    %v1143 = vpop.f32.mrb[0].mxu0
    %1144 = vmatprep.mubr.f32.mxu0 0.0
    %1145 = vmatmul.mubr.f32.gmra.mrb[0].mxu0 %v959
    %v1146 = vpop.f32.mrb[0].mxu0
    %v1147 = vadd.f32 %v917, %v1146
    %v1148 = vpop.f32.mrb[0].mxu0
    %1149 = vmatprep.mubr.f32.mxu0 0.0
    %1150 = vmatmul.mubr.f32.gmra.mrb[0].mxu0 %v962
    %v1151 = vpop.f32.mrb[0].mxu0
    %v1152 = vadd.f32 %v917, %v1151
    %v1153 = vpop.f32.mrb[0].mxu0
    %1154 = vmatprep.mubr.f32.mxu0 0.0
    %1155 = vmatmul.mubr.f32.gmra.mrb[0].mxu0 %v965
    %v1156 = vpop.f32.mrb[0].mxu0
    %v1157 = vadd.f32 %v917, %v1156
    %v1158 = vpop.f32.mrb[0].mxu0
    %1159 = vmatprep.mubr.f32.mxu0 0.0
    %1160 = vmatmul.mubr.f32.gmra.mrb[0].mxu0 %v968
    %v1161 = vpop.f32.mrb[0].mxu0
    %v1162 = vadd.f32 %v917, %v1161
    %v1163 = vpop.f32.mrb[0].mxu0
    %1164 = vmatprep.mubr.f32.mxu0 0.0
    %1165 = vmatmul.mubr.f32.gmra.mrb[0].mxu0 %v971
    %v1166 = vpop.f32.mrb[0].mxu0
    %v1167 = vadd.f32 %v917, %v1166
    %v1168 = vpop.f32.mrb[0].mxu0
    %1169 = vmatprep.mubr.f32.mxu0 0.0
    %1170 = vmatmul.mubr.f32.gmra.mrb[0].mxu0 %v974
    %v1171 = vpop.f32.mrb[0].mxu0
    %v1172 = vadd.f32 %v917, %v1171
    %v1173 = vpop.f32.mrb[0].mxu0
    %1174 = vmatprep.mubr.f32.mxu0 0.0
    %1175 = vmatmul.mubr.f32.gmra.mrb[0].mxu0 %v977
    %v1176 = vpop.f32.mrb[0].mxu0
    %v1177 = vadd.f32 %v917, %v1176
    %v1178 = vpop.f32.mrb[0].mxu0
    %1179 = vmatprep.mubr.f32.mxu0 0.0
    %1180 = vmatmul.mubr.f32.gmra.mrb[0].mxu0 %v980
    %v1181 = vpop.f32.mrb[0].mxu0
    %v1182 = vadd.f32 %v917, %v1181
    %v1183 = vpop.f32.mrb[0].mxu0
    %1184 = vmatprep.mubr.f32.mxu0 0.0
    %1185 = vmatmul.mubr.f32.gmra.mrb[0].mxu0 %v983
    %v1186 = vpop.f32.mrb[0].mxu0
    %v1187 = vadd.f32 %v917, %v1186
    %v1188 = vpop.f32.mrb[0].mxu0
    %1189 = vmatprep.mubr.f32.mxu0 0.0
    %1190 = vmatmul.mubr.f32.gmra.mrb[0].mxu0 %v986
    %v1191 = vpop.f32.mrb[0].mxu0
    %v1192 = vadd.f32 %v917, %v1191
    %v1193 = vpop.f32.mrb[0].mxu0
    %1194 = vmatprep.mubr.f32.mxu0 0.0
    %1195 = vmatmul.mubr.f32.gmra.mrb[0].mxu0 %v989
    %v1196 = vpop.f32.mrb[0].mxu0
    %v1197 = vadd.f32 %v917, %v1196
    %v1198 = vpop.f32.mrb[0].mxu0
    %1199 = vmatprep.mubr.f32.mxu0 0.0
    %1200 = vmatmul.mubr.f32.gmra.mrb[0].mxu0 %v992
    %v1201 = vpop.f32.mrb[0].mxu0
    %v1202 = vadd.f32 %v917, %v1201
    %v1203 = vpop.f32.mrb[0].mxu0
    %1204 = vmatprep.mubr.f32.mxu0 0.0
    %1205 = vmatmul.mubr.f32.gmra.mrb[0].mxu0 %v995
    %v1206 = vpop.f32.mrb[0].mxu0
    %v1207 = vadd.f32 %v917, %v1206
    %v1208 = vpop.f32.mrb[0].mxu0
    %1209 = vmatprep.mubr.f32.mxu0 0.0
    %1210 = vmatmul.mubr.f32.gmra.mrb[0].mxu0 %v998
    %v1211 = vpop.f32.mrb[0].mxu0
    %v1212 = vadd.f32 %v917, %v1211
    %v1213 = vpop.f32.mrb[0].mxu0
    %1214 = vmatprep.mubr.f32.mxu0 0.0
    %1215 = vmatmul.mubr.f32.gmra.mrb[0].mxu0 %v1001
    %v1216 = vpop.f32.mrb[0].mxu0
    %v1217 = vadd.f32 %v917, %v1216
    %v1218 = vpop.f32.mrb[0].mxu0
    %1219 = vmatprep.mubr.f32.mxu0 0.0
    %1220 = vmatmul.mubr.f32.gmra.mrb[0].mxu0 %v1004
    %v1221 = vpop.f32.mrb[0].mxu0
    %v1222 = vadd.f32 %v917, %v1221
    %v1223 = vpop.f32.mrb[0].mxu0
    %1224 = vmatprep.mubr.f32.mxu0 0.0
    %1225 = vmatmul.mubr.f32.gmra.mrb[0].mxu0 %v1007
    %v1226 = vpop.f32.mrb[0].mxu0
    %v1227 = vadd.f32 %v917, %v1226
    %v1228 = vpop.f32.mrb[0].mxu0
    %1229 = vmatprep.mubr.f32.mxu0 0.0
    %1230 = vmatmul.mubr.f32.gmra.mrb[0].mxu0 %v1010
    %v1231 = vpop.f32.mrb[0].mxu0
    %v1232 = vadd.f32 %v917, %v1231
    %v1233 = vpop.f32.mrb[0].mxu0
    %1234 = vmatprep.mubr.f32.mxu0 0.0
    %1235 = vmatmul.mubr.f32.gmra.mrb[0].mxu0 %v1013
    %v1236 = vpop.f32.mrb[0].mxu0
    %v1237 = vadd.f32 %v917, %v1236
    %v1238 = vpop.f32.mrb[0].mxu0
    %1239 = vdwg.mxu0
    %v1240 = vmax.f32 %v1082, 0.0
    %v1241 = vmax.f32 %v1087, 0.0
    %v1242 = vmax.f32 %v1092, 0.0
    %v1243 = vmax.f32 %v1097, 0.0
    %v1244 = vmax.f32 %v1102, 0.0
    %v1245 = vmax.f32 %v1107, 0.0
    %v1246 = vmax.f32 %v1112, 0.0
    %v1247 = vmax.f32 %v1117, 0.0
    %v1248 = vmax.f32 %v1122, 0.0
    %v1249 = vmax.f32 %v1127, 0.0
    %v1250 = vmax.f32 %v1132, 0.0
    %v1251 = vmax.f32 %v1137, 0.0
    %v1252 = vmax.f32 %v1142, 0.0
    %v1253 = vmax.f32 %v1147, 0.0
    %v1254 = vmax.f32 %v1152, 0.0
    %v1255 = vmax.f32 %v1157, 0.0
    %v1256 = vmax.f32 %v1162, 0.0
    %v1257 = vmax.f32 %v1167, 0.0
    %v1258 = vmax.f32 %v1172, 0.0
    %v1259 = vmax.f32 %v1177, 0.0
    %v1260 = vmax.f32 %v1182, 0.0
    %v1261 = vmax.f32 %v1187, 0.0
    %v1262 = vmax.f32 %v1192, 0.0
    %v1263 = vmax.f32 %v1197, 0.0
    %v1264 = vmax.f32 %v1202, 0.0
    %v1265 = vmax.f32 %v1207, 0.0
    %v1266 = vmax.f32 %v1212, 0.0
    %v1267 = vmax.f32 %v1217, 0.0
    %v1268 = vmax.f32 %v1222, 0.0
    %v1269 = vmax.f32 %v1227, 0.0
    %v1270 = vmax.f32 %v1232, 0.0
    %v1271 = vmax.f32 %v1237, 0.0
    %v1272 = vadd.f32 %v870, %v1240
    %v1273 = vadd.f32 %v871, %v1241
    %v1274 = vadd.f32 %v872, %v1242
    %v1275 = vadd.f32 %v873, %v1243
    %v1276 = vadd.f32 %v874, %v1244
    %v1277 = vadd.f32 %v875, %v1245
    %v1278 = vadd.f32 %v876, %v1246
    %v1279 = vadd.f32 %v877, %v1247
    %v1280 = vadd.f32 %v878, %v1248
    %v1281 = vadd.f32 %v879, %v1249
    %v1282 = vadd.f32 %v880, %v1250
    %v1283 = vadd.f32 %v881, %v1251
    %v1284 = vadd.f32 %v882, %v1252
    %v1285 = vadd.f32 %v883, %v1253
    %v1286 = vadd.f32 %v884, %v1254
    %v1287 = vadd.f32 %v885, %v1255
    %v1288 = vadd.f32 %v886, %v1256
    %v1289 = vadd.f32 %v887, %v1257
    %v1290 = vadd.f32 %v888, %v1258
    %v1291 = vadd.f32 %v889, %v1259
    %v1292 = vadd.f32 %v890, %v1260
    %v1293 = vadd.f32 %v891, %v1261
    %v1294 = vadd.f32 %v892, %v1262
    %v1295 = vadd.f32 %v893, %v1263
    %v1296 = vadd.f32 %v894, %v1264
    %v1297 = vadd.f32 %v895, %v1265
    %v1298 = vadd.f32 %v896, %v1266
    %v1299 = vadd.f32 %v897, %v1267
    %v1300 = vadd.f32 %v898, %v1268
    %v1301 = vadd.f32 %v899, %v1269
    %v1302 = vadd.f32 %v900, %v1270
    %v1303 = vadd.f32 %v901, %v1271
    %v1304 = vld [vmem:[%s6] sm:$0xff]
    %v1305 = vld [vmem:[%s6 + $0x8] sm:$0xff]
    %v1306 = vld [vmem:[%s6 + $0x10] sm:$0xff]
    %v1307 = vld [vmem:[%s6 + $0x18] sm:$0xff]
    %v1308 = vld [vmem:[%s6 + $0x20] sm:$0xff]
    %v1309 = vld [vmem:[%s6 + $0x28] sm:$0xff]
    %v1310 = vld [vmem:[%s6 + $0x30] sm:$0xff]
    %v1311 = vld [vmem:[%s6 + $0x38] sm:$0xff]
    %v1312 = vld [vmem:[%s7] sm:$0x1]
    %v1314 = vlaneseq
    %v1315 = vshrl.u32 %v1314, 7
    %v1316 = vsub.s32 0, %v1315
    %v1317 = vrot.slane %v1312, %v1316
    %v1320 = vsel %vm516, %v1272, 0
    %v1323 = vsel %vm516, %v1273, 0
    %v1326 = vsel %vm516, %v1274, 0
    %v1329 = vsel %vm516, %v1275, 0
    %v1332 = vsel %vm516, %v1276, 0
    %v1335 = vsel %vm516, %v1277, 0
    %v1338 = vsel %vm516, %v1278, 0
    %v1341 = vsel %vm516, %v1279, 0
    %v1344 = vsel %vm516, %v1280, 0
    %v1347 = vsel %vm516, %v1281, 0
    %v1350 = vsel %vm516, %v1282, 0
    %v1353 = vsel %vm516, %v1283, 0
    %v1356 = vsel %vm516, %v1284, 0
    %v1359 = vsel %vm516, %v1285, 0
    %v1362 = vsel %vm516, %v1286, 0
    %v1365 = vsel %vm516, %v1287, 0
    %v1368 = vsel %vm516, %v1288, 0
    %v1371 = vsel %vm516, %v1289, 0
    %v1374 = vsel %vm516, %v1290, 0
    %v1377 = vsel %vm516, %v1291, 0
    %v1380 = vsel %vm516, %v1292, 0
    %v1383 = vsel %vm516, %v1293, 0
    %v1386 = vsel %vm516, %v1294, 0
    %v1389 = vsel %vm516, %v1295, 0
    %v1392 = vsel %vm516, %v1296, 0
    %v1395 = vsel %vm516, %v1297, 0
    %v1398 = vsel %vm516, %v1298, 0
    %v1401 = vsel %vm516, %v1299, 0
    %v1404 = vsel %vm516, %v1300, 0
    %v1407 = vsel %vm516, %v1301, 0
    %v1410 = vsel %vm516, %v1302, 0
    %v1413 = vsel %vm516, %v1303, 0
    %1415 = vmatprep.subr.mxu0 0.0
    %1416 = vmatpush1.msra.mxu0 %v1304
    %1417 = vmatprep.subr.mxu0 0.0
    %1418 = vmatpush1.msra.mxu0 %v1305
    %1419 = vmatprep.subr.mxu0 0.0
    %1420 = vmatpush1.msra.mxu0 %v1306
    %1421 = vmatprep.subr.mxu0 0.0
    %1422 = vmatpush1.msra.mxu0 %v1307
    %1423 = vmatprep.subr.mxu0 0.0
    %1424 = vmatpush1.msra.mxu0 %v1308
    %1425 = vmatprep.subr.mxu0 0.0
    %1426 = vmatpush1.msra.mxu0 %v1309
    %1427 = vmatprep.subr.mxu0 0.0
    %1428 = vmatpush1.msra.mxu0 %v1310
    %1429 = vmatprep.subr.mxu0 0.0
    %1430 = vmatpush1.msra.mxu0 %v1311
    %1431 = vmatprep.subr.mxu0 0.0
    %1432 = vmatpush1.msra.mxu0 0.0
    %1433 = vmatprep.subr.mxu0 0.0
    %1434 = vmatpush1.msra.mxu0 0.0
    %1435 = vmatprep.subr.mxu0 0.0
    %1436 = vmatpush1.msra.mxu0 0.0
    %1437 = vmatprep.subr.mxu0 0.0
    %1438 = vmatpush1.msra.mxu0 0.0
    %1439 = vmatprep.subr.mxu0 0.0
    %1440 = vmatpush1.msra.mxu0 0.0
    %1441 = vmatprep.subr.mxu0 0.0
    %1442 = vmatpush1.msra.mxu0 0.0
    %1443 = vmatprep.subr.mxu0 0.0
    %1444 = vmatpush1.msra.mxu0 0.0
    %1445 = vmatprep.subr.mxu0 0.0
    %1446 = vmatpush1.msra.mxu0 0.0
    %1447 = vmatprep.subr.mxu0 0.0
    %1448 = vmatpush1.msra.mxu0 0.0
    %1449 = vmatprep.subr.mxu0 0.0
    %1450 = vmatpush1.msra.mxu0 0.0
    %1451 = vmatprep.subr.mxu0 0.0
    %1452 = vmatpush1.msra.mxu0 0.0
    %1453 = vmatprep.subr.mxu0 0.0
    %1454 = vmatpush1.msra.mxu0 0.0
    %1455 = vmatprep.subr.mxu0 0.0
    %1456 = vmatpush1.msra.mxu0 0.0
    %1457 = vmatprep.subr.mxu0 0.0
    %1458 = vmatpush1.msra.mxu0 0.0
    %1459 = vmatprep.subr.mxu0 0.0
    %1460 = vmatpush1.msra.mxu0 0.0
    %1461 = vmatprep.subr.mxu0 0.0
    %1462 = vmatpush1.msra.mxu0 0.0
    %1463 = vmatprep.subr.mxu0 0.0
    %1464 = vmatpush1.msra.mxu0 0.0
    %1465 = vmatprep.subr.mxu0 0.0
    %1466 = vmatpush1.msra.mxu0 0.0
    %1467 = vmatprep.subr.mxu0 0.0
    %1468 = vmatpush1.msra.mxu0 0.0
    %1469 = vmatprep.subr.mxu0 0.0
    %1470 = vmatpush1.msra.mxu0 0.0
    %1471 = vmatprep.subr.mxu0 0.0
    %1472 = vmatpush1.msra.mxu0 0.0
    %1473 = vmatprep.subr.mxu0 0.0
    %1474 = vmatpush1.msra.mxu0 0.0
    %1475 = vmatprep.subr.mxu0 0.0
    %1476 = vmatpush1.msra.mxu0 0.0
    %1477 = vmatprep.subr.mxu0 0.0
    %1478 = vmatpush1.msra.mxu0 0.0
    %1479 = vmatprep.mubr.f32.mxu0 0.0
    %1480 = vmatmul.mubr.f32.gmra.mrb[0].mxu0 %v1320
    %v1481 = vpop.f32.mrb[0].mxu0
    %v1482 = vadd.f32 %v1317, %v1481
    %v1483 = vpop.f32.mrb[0].mxu0
    %1484 = vmatprep.mubr.f32.mxu0 0.0
    %1485 = vmatmul.mubr.f32.gmra.mrb[0].mxu0 %v1323
    %v1486 = vpop.f32.mrb[0].mxu0
    %v1487 = vadd.f32 %v1317, %v1486
    %v1488 = vpop.f32.mrb[0].mxu0
    %1489 = vmatprep.mubr.f32.mxu0 0.0
    %1490 = vmatmul.mubr.f32.gmra.mrb[0].mxu0 %v1326
    %v1491 = vpop.f32.mrb[0].mxu0
    %v1492 = vadd.f32 %v1317, %v1491
    %v1493 = vpop.f32.mrb[0].mxu0
    %1494 = vmatprep.mubr.f32.mxu0 0.0
    %1495 = vmatmul.mubr.f32.gmra.mrb[0].mxu0 %v1329
    %v1496 = vpop.f32.mrb[0].mxu0
    %v1497 = vadd.f32 %v1317, %v1496
    %v1498 = vpop.f32.mrb[0].mxu0
    %1499 = vmatprep.mubr.f32.mxu0 0.0
    %1500 = vmatmul.mubr.f32.gmra.mrb[0].mxu0 %v1332
    %v1501 = vpop.f32.mrb[0].mxu0
    %v1502 = vadd.f32 %v1317, %v1501
    %v1503 = vpop.f32.mrb[0].mxu0
    %1504 = vmatprep.mubr.f32.mxu0 0.0
    %1505 = vmatmul.mubr.f32.gmra.mrb[0].mxu0 %v1335
    %v1506 = vpop.f32.mrb[0].mxu0
    %v1507 = vadd.f32 %v1317, %v1506
    %v1508 = vpop.f32.mrb[0].mxu0
    %1509 = vmatprep.mubr.f32.mxu0 0.0
    %1510 = vmatmul.mubr.f32.gmra.mrb[0].mxu0 %v1338
    %v1511 = vpop.f32.mrb[0].mxu0
    %v1512 = vadd.f32 %v1317, %v1511
    %v1513 = vpop.f32.mrb[0].mxu0
    %1514 = vmatprep.mubr.f32.mxu0 0.0
    %1515 = vmatmul.mubr.f32.gmra.mrb[0].mxu0 %v1341
    %v1516 = vpop.f32.mrb[0].mxu0
    %v1517 = vadd.f32 %v1317, %v1516
    %v1518 = vpop.f32.mrb[0].mxu0
    %1519 = vmatprep.mubr.f32.mxu0 0.0
    %1520 = vmatmul.mubr.f32.gmra.mrb[0].mxu0 %v1344
    %v1521 = vpop.f32.mrb[0].mxu0
    %v1522 = vadd.f32 %v1317, %v1521
    %v1523 = vpop.f32.mrb[0].mxu0
    %1524 = vmatprep.mubr.f32.mxu0 0.0
    %1525 = vmatmul.mubr.f32.gmra.mrb[0].mxu0 %v1347
    %v1526 = vpop.f32.mrb[0].mxu0
    %v1527 = vadd.f32 %v1317, %v1526
    %v1528 = vpop.f32.mrb[0].mxu0
    %1529 = vmatprep.mubr.f32.mxu0 0.0
    %1530 = vmatmul.mubr.f32.gmra.mrb[0].mxu0 %v1350
    %v1531 = vpop.f32.mrb[0].mxu0
    %v1532 = vadd.f32 %v1317, %v1531
    %v1533 = vpop.f32.mrb[0].mxu0
    %1534 = vmatprep.mubr.f32.mxu0 0.0
    %1535 = vmatmul.mubr.f32.gmra.mrb[0].mxu0 %v1353
    %v1536 = vpop.f32.mrb[0].mxu0
    %v1537 = vadd.f32 %v1317, %v1536
    %v1538 = vpop.f32.mrb[0].mxu0
    %1539 = vmatprep.mubr.f32.mxu0 0.0
    %1540 = vmatmul.mubr.f32.gmra.mrb[0].mxu0 %v1356
    %v1541 = vpop.f32.mrb[0].mxu0
    %v1542 = vadd.f32 %v1317, %v1541
    %v1543 = vpop.f32.mrb[0].mxu0
    %1544 = vmatprep.mubr.f32.mxu0 0.0
    %1545 = vmatmul.mubr.f32.gmra.mrb[0].mxu0 %v1359
    %v1546 = vpop.f32.mrb[0].mxu0
    %v1547 = vadd.f32 %v1317, %v1546
    %v1548 = vpop.f32.mrb[0].mxu0
    %1549 = vmatprep.mubr.f32.mxu0 0.0
    %1550 = vmatmul.mubr.f32.gmra.mrb[0].mxu0 %v1362
    %v1551 = vpop.f32.mrb[0].mxu0
    %v1552 = vadd.f32 %v1317, %v1551
    %v1553 = vpop.f32.mrb[0].mxu0
    %1554 = vmatprep.mubr.f32.mxu0 0.0
    %1555 = vmatmul.mubr.f32.gmra.mrb[0].mxu0 %v1365
    %v1556 = vpop.f32.mrb[0].mxu0
    %v1557 = vadd.f32 %v1317, %v1556
    %v1558 = vpop.f32.mrb[0].mxu0
    %1559 = vmatprep.mubr.f32.mxu0 0.0
    %1560 = vmatmul.mubr.f32.gmra.mrb[0].mxu0 %v1368
    %v1561 = vpop.f32.mrb[0].mxu0
    %v1562 = vadd.f32 %v1317, %v1561
    %v1563 = vpop.f32.mrb[0].mxu0
    %1564 = vmatprep.mubr.f32.mxu0 0.0
    %1565 = vmatmul.mubr.f32.gmra.mrb[0].mxu0 %v1371
    %v1566 = vpop.f32.mrb[0].mxu0
    %v1567 = vadd.f32 %v1317, %v1566
    %v1568 = vpop.f32.mrb[0].mxu0
    %1569 = vmatprep.mubr.f32.mxu0 0.0
    %1570 = vmatmul.mubr.f32.gmra.mrb[0].mxu0 %v1374
    %v1571 = vpop.f32.mrb[0].mxu0
    %v1572 = vadd.f32 %v1317, %v1571
    %v1573 = vpop.f32.mrb[0].mxu0
    %1574 = vmatprep.mubr.f32.mxu0 0.0
    %1575 = vmatmul.mubr.f32.gmra.mrb[0].mxu0 %v1377
    %v1576 = vpop.f32.mrb[0].mxu0
    %v1577 = vadd.f32 %v1317, %v1576
    %v1578 = vpop.f32.mrb[0].mxu0
    %1579 = vmatprep.mubr.f32.mxu0 0.0
    %1580 = vmatmul.mubr.f32.gmra.mrb[0].mxu0 %v1380
    %v1581 = vpop.f32.mrb[0].mxu0
    %v1582 = vadd.f32 %v1317, %v1581
    %v1583 = vpop.f32.mrb[0].mxu0
    %1584 = vmatprep.mubr.f32.mxu0 0.0
    %1585 = vmatmul.mubr.f32.gmra.mrb[0].mxu0 %v1383
    %v1586 = vpop.f32.mrb[0].mxu0
    %v1587 = vadd.f32 %v1317, %v1586
    %v1588 = vpop.f32.mrb[0].mxu0
    %1589 = vmatprep.mubr.f32.mxu0 0.0
    %1590 = vmatmul.mubr.f32.gmra.mrb[0].mxu0 %v1386
    %v1591 = vpop.f32.mrb[0].mxu0
    %v1592 = vadd.f32 %v1317, %v1591
    %v1593 = vpop.f32.mrb[0].mxu0
    %1594 = vmatprep.mubr.f32.mxu0 0.0
    %1595 = vmatmul.mubr.f32.gmra.mrb[0].mxu0 %v1389
    %v1596 = vpop.f32.mrb[0].mxu0
    %v1597 = vadd.f32 %v1317, %v1596
    %v1598 = vpop.f32.mrb[0].mxu0
    %1599 = vmatprep.mubr.f32.mxu0 0.0
    %1600 = vmatmul.mubr.f32.gmra.mrb[0].mxu0 %v1392
    %v1601 = vpop.f32.mrb[0].mxu0
    %v1602 = vadd.f32 %v1317, %v1601
    %v1603 = vpop.f32.mrb[0].mxu0
    %1604 = vmatprep.mubr.f32.mxu0 0.0
    %1605 = vmatmul.mubr.f32.gmra.mrb[0].mxu0 %v1395
    %v1606 = vpop.f32.mrb[0].mxu0
    %v1607 = vadd.f32 %v1317, %v1606
    %v1608 = vpop.f32.mrb[0].mxu0
    %1609 = vmatprep.mubr.f32.mxu0 0.0
    %1610 = vmatmul.mubr.f32.gmra.mrb[0].mxu0 %v1398
    %v1611 = vpop.f32.mrb[0].mxu0
    %v1612 = vadd.f32 %v1317, %v1611
    %v1613 = vpop.f32.mrb[0].mxu0
    %1614 = vmatprep.mubr.f32.mxu0 0.0
    %1615 = vmatmul.mubr.f32.gmra.mrb[0].mxu0 %v1401
    %v1616 = vpop.f32.mrb[0].mxu0
    %v1617 = vadd.f32 %v1317, %v1616
    %v1618 = vpop.f32.mrb[0].mxu0
    %1619 = vmatprep.mubr.f32.mxu0 0.0
    %1620 = vmatmul.mubr.f32.gmra.mrb[0].mxu0 %v1404
    %v1621 = vpop.f32.mrb[0].mxu0
    %v1622 = vadd.f32 %v1317, %v1621
    %v1623 = vpop.f32.mrb[0].mxu0
    %1624 = vmatprep.mubr.f32.mxu0 0.0
    %1625 = vmatmul.mubr.f32.gmra.mrb[0].mxu0 %v1407
    %v1626 = vpop.f32.mrb[0].mxu0
    %v1627 = vadd.f32 %v1317, %v1626
    %v1628 = vpop.f32.mrb[0].mxu0
    %1629 = vmatprep.mubr.f32.mxu0 0.0
    %1630 = vmatmul.mubr.f32.gmra.mrb[0].mxu0 %v1410
    %v1631 = vpop.f32.mrb[0].mxu0
    %v1632 = vadd.f32 %v1317, %v1631
    %v1633 = vpop.f32.mrb[0].mxu0
    %1634 = vmatprep.mubr.f32.mxu0 0.0
    %1635 = vmatmul.mubr.f32.gmra.mrb[0].mxu0 %v1413
    %v1636 = vpop.f32.mrb[0].mxu0
    %v1637 = vadd.f32 %v1317, %v1636
    %v1638 = vpop.f32.mrb[0].mxu0
    %1639 = vdwg.mxu0
    %v1640 = vmax.f32 %v1482, 0.0
    %v1641 = vmax.f32 %v1487, 0.0
    %v1642 = vmax.f32 %v1492, 0.0
    %v1643 = vmax.f32 %v1497, 0.0
    %v1644 = vmax.f32 %v1502, 0.0
    %v1645 = vmax.f32 %v1507, 0.0
    %v1646 = vmax.f32 %v1512, 0.0
    %v1647 = vmax.f32 %v1517, 0.0
    %v1648 = vmax.f32 %v1522, 0.0
    %v1649 = vmax.f32 %v1527, 0.0
    %v1650 = vmax.f32 %v1532, 0.0
    %v1651 = vmax.f32 %v1537, 0.0
    %v1652 = vmax.f32 %v1542, 0.0
    %v1653 = vmax.f32 %v1547, 0.0
    %v1654 = vmax.f32 %v1552, 0.0
    %v1655 = vmax.f32 %v1557, 0.0
    %v1656 = vmax.f32 %v1562, 0.0
    %v1657 = vmax.f32 %v1567, 0.0
    %v1658 = vmax.f32 %v1572, 0.0
    %v1659 = vmax.f32 %v1577, 0.0
    %v1660 = vmax.f32 %v1582, 0.0
    %v1661 = vmax.f32 %v1587, 0.0
    %v1662 = vmax.f32 %v1592, 0.0
    %v1663 = vmax.f32 %v1597, 0.0
    %v1664 = vmax.f32 %v1602, 0.0
    %v1665 = vmax.f32 %v1607, 0.0
    %v1666 = vmax.f32 %v1612, 0.0
    %v1667 = vmax.f32 %v1617, 0.0
    %v1668 = vmax.f32 %v1622, 0.0
    %v1669 = vmax.f32 %v1627, 0.0
    %v1670 = vmax.f32 %v1632, 0.0
    %v1671 = vmax.f32 %v1637, 0.0
    %v1672 = vld [vmem:[%s8] sm:$0x1]
    %v1674 = vlaneseq
    %v1675 = vshrl.u32 %v1674, 7
    %v1676 = vsub.s32 0, %v1675
    %v1677 = vrot.slane %v1672, %v1676
    %v1679 = vmul.f32 %v1677, %v33
    %v1680 = vmul.f32 %v1677, %v34
    %v1681 = vmul.f32 %v1677, %v35
    %v1682 = vmul.f32 %v1677, %v36
    %v1683 = vmul.f32 %v1677, %v37
    %v1684 = vmul.f32 %v1677, %v38
    %v1685 = vmul.f32 %v1677, %v39
    %v1686 = vmul.f32 %v1677, %v40
    %v1687 = vmul.f32 %v1677, %v41
    %v1688 = vmul.f32 %v1677, %v42
    %v1689 = vmul.f32 %v1677, %v43
    %v1690 = vmul.f32 %v1677, %v44
    %v1691 = vmul.f32 %v1677, %v45
    %v1692 = vmul.f32 %v1677, %v46
    %v1693 = vmul.f32 %v1677, %v47
    %v1694 = vmul.f32 %v1677, %v48
    %v1695 = vmul.f32 %v1677, %v49
    %v1696 = vmul.f32 %v1677, %v50
    %v1697 = vmul.f32 %v1677, %v51
    %v1698 = vmul.f32 %v1677, %v52
    %v1699 = vmul.f32 %v1677, %v53
    %v1700 = vmul.f32 %v1677, %v54
    %v1701 = vmul.f32 %v1677, %v55
    %v1702 = vmul.f32 %v1677, %v56
    %v1703 = vmul.f32 %v1677, %v57
    %v1704 = vmul.f32 %v1677, %v58
    %v1705 = vmul.f32 %v1677, %v59
    %v1706 = vmul.f32 %v1677, %v60
    %v1707 = vmul.f32 %v1677, %v61
    %v1708 = vmul.f32 %v1677, %v62
    %v1709 = vmul.f32 %v1677, %v63
    %v1710 = vmul.f32 %v1677, %v64
    %v1711 = vsub.f32 1.0, %v1672
    %v1713 = vlaneseq
    %v1714 = vshrl.u32 %v1713, 7
    %v1715 = vsub.s32 0, %v1714
    %v1716 = vrot.slane %v1711, %v1715
    %v1718 = vadd.f32 %v1679, %v1716
    %v1719 = vadd.f32 %v1680, %v1716
    %v1720 = vadd.f32 %v1681, %v1716
    %v1721 = vadd.f32 %v1682, %v1716
    %v1722 = vadd.f32 %v1683, %v1716
    %v1723 = vadd.f32 %v1684, %v1716
    %v1724 = vadd.f32 %v1685, %v1716
    %v1725 = vadd.f32 %v1686, %v1716
    %v1726 = vadd.f32 %v1687, %v1716
    %v1727 = vadd.f32 %v1688, %v1716
    %v1728 = vadd.f32 %v1689, %v1716
    %v1729 = vadd.f32 %v1690, %v1716
    %v1730 = vadd.f32 %v1691, %v1716
    %v1731 = vadd.f32 %v1692, %v1716
    %v1732 = vadd.f32 %v1693, %v1716
    %v1733 = vadd.f32 %v1694, %v1716
    %v1734 = vadd.f32 %v1695, %v1716
    %v1735 = vadd.f32 %v1696, %v1716
    %v1736 = vadd.f32 %v1697, %v1716
    %v1737 = vadd.f32 %v1698, %v1716
    %v1738 = vadd.f32 %v1699, %v1716
    %v1739 = vadd.f32 %v1700, %v1716
    %v1740 = vadd.f32 %v1701, %v1716
    %v1741 = vadd.f32 %v1702, %v1716
    %v1742 = vadd.f32 %v1703, %v1716
    %v1743 = vadd.f32 %v1704, %v1716
    %v1744 = vadd.f32 %v1705, %v1716
    %v1745 = vadd.f32 %v1706, %v1716
    %v1746 = vadd.f32 %v1707, %v1716
    %v1747 = vadd.f32 %v1708, %v1716
    %v1748 = vadd.f32 %v1709, %v1716
    %v1749 = vadd.f32 %v1710, %v1716
    %v1750 = vmul.f32 %v1640, %v1718
    %v1751 = vmul.f32 %v1641, %v1719
    %v1752 = vmul.f32 %v1642, %v1720
    %v1753 = vmul.f32 %v1643, %v1721
    %v1754 = vmul.f32 %v1644, %v1722
    %v1755 = vmul.f32 %v1645, %v1723
    %v1756 = vmul.f32 %v1646, %v1724
    %v1757 = vmul.f32 %v1647, %v1725
    %v1758 = vmul.f32 %v1648, %v1726
    %v1759 = vmul.f32 %v1649, %v1727
    %v1760 = vmul.f32 %v1650, %v1728
    %v1761 = vmul.f32 %v1651, %v1729
    %v1762 = vmul.f32 %v1652, %v1730
    %v1763 = vmul.f32 %v1653, %v1731
    %v1764 = vmul.f32 %v1654, %v1732
    %v1765 = vmul.f32 %v1655, %v1733
    %v1766 = vmul.f32 %v1656, %v1734
    %v1767 = vmul.f32 %v1657, %v1735
    %v1768 = vmul.f32 %v1658, %v1736
    %v1769 = vmul.f32 %v1659, %v1737
    %v1770 = vmul.f32 %v1660, %v1738
    %v1771 = vmul.f32 %v1661, %v1739
    %v1772 = vmul.f32 %v1662, %v1740
    %v1773 = vmul.f32 %v1663, %v1741
    %v1774 = vmul.f32 %v1664, %v1742
    %v1775 = vmul.f32 %v1665, %v1743
    %v1776 = vmul.f32 %v1666, %v1744
    %v1777 = vmul.f32 %v1667, %v1745
    %v1778 = vmul.f32 %v1668, %v1746
    %v1779 = vmul.f32 %v1669, %v1747
    %v1780 = vmul.f32 %v1670, %v1748
    %v1781 = vmul.f32 %v1671, %v1749
    %1782 = vxpose.xlu0.b32.start [1/16] %v1750, 128
    %1783 = vxpose.xlu0.b32.cont [2/16] %v1751, 128
    %1784 = vxpose.xlu0.b32.cont [3/16] %v1752, 128
    %1785 = vxpose.xlu0.b32.cont [4/16] %v1753, 128
    %1786 = vxpose.xlu0.b32.cont [5/16] %v1754, 128
    %1787 = vxpose.xlu0.b32.cont [6/16] %v1755, 128
    %1788 = vxpose.xlu0.b32.cont [7/16] %v1756, 128
    %1789 = vxpose.xlu0.b32.cont [8/16] %v1757, 128
    %1790 = vxpose.xlu0.b32.cont [9/16] %v1758, 128
    %1791 = vxpose.xlu0.b32.cont [10/16] %v1759, 128
    %1792 = vxpose.xlu0.b32.cont [11/16] %v1760, 128
    %1793 = vxpose.xlu0.b32.cont [12/16] %v1761, 128
    %1794 = vxpose.xlu0.b32.cont [13/16] %v1762, 128
    %1795 = vxpose.xlu0.b32.cont [14/16] %v1763, 128
    %1796 = vxpose.xlu0.b32.cont [15/16] %v1764, 128
    %1797 = vxpose.xlu0.b32.end [16/16] %v1765, 128
    %v1798 = vpop.trf.xlu0
    %v1799 = vpop.trf.xlu0
    %v1800 = vpop.trf.xlu0
    %v1801 = vpop.trf.xlu0
    %v1802 = vpop.trf.xlu0
    %v1803 = vpop.trf.xlu0
    %v1804 = vpop.trf.xlu0
    %v1805 = vpop.trf.xlu0
    %v1806 = vpop.trf.xlu0
    %v1807 = vpop.trf.xlu0
    %v1808 = vpop.trf.xlu0
    %v1809 = vpop.trf.xlu0
    %v1810 = vpop.trf.xlu0
    %v1811 = vpop.trf.xlu0
    %v1812 = vpop.trf.xlu0
    %v1813 = vpop.trf.xlu0
    %1814 = vxpose.xlu0.b32.start [1/16] %v1766, 128
    %1815 = vxpose.xlu0.b32.cont [2/16] %v1767, 128
    %1816 = vxpose.xlu0.b32.cont [3/16] %v1768, 128
    %1817 = vxpose.xlu0.b32.cont [4/16] %v1769, 128
    %1818 = vxpose.xlu0.b32.cont [5/16] %v1770, 128
    %1819 = vxpose.xlu0.b32.cont [6/16] %v1771, 128
    %1820 = vxpose.xlu0.b32.cont [7/16] %v1772, 128
    %1821 = vxpose.xlu0.b32.cont [8/16] %v1773, 128
    %1822 = vxpose.xlu0.b32.cont [9/16] %v1774, 128
    %1823 = vxpose.xlu0.b32.cont [10/16] %v1775, 128
    %1824 = vxpose.xlu0.b32.cont [11/16] %v1776, 128
    %1825 = vxpose.xlu0.b32.cont [12/16] %v1777, 128
    %1826 = vxpose.xlu0.b32.cont [13/16] %v1778, 128
    %1827 = vxpose.xlu0.b32.cont [14/16] %v1779, 128
    %1828 = vxpose.xlu0.b32.cont [15/16] %v1780, 128
    %1829 = vxpose.xlu0.b32.end [16/16] %v1781, 128
    %v1830 = vpop.trf.xlu0
    %v1831 = vpop.trf.xlu0
    %v1832 = vpop.trf.xlu0
    %v1833 = vpop.trf.xlu0
    %v1834 = vpop.trf.xlu0
    %v1835 = vpop.trf.xlu0
    %v1836 = vpop.trf.xlu0
    %v1837 = vpop.trf.xlu0
    %v1838 = vpop.trf.xlu0
    %v1839 = vpop.trf.xlu0
    %v1840 = vpop.trf.xlu0
    %v1841 = vpop.trf.xlu0
    %v1842 = vpop.trf.xlu0
    %v1843 = vpop.trf.xlu0
    %v1844 = vpop.trf.xlu0
    %v1845 = vpop.trf.xlu0
    %1846 = vst [vmem:[#allocation2] sm:$0xff] %v1798
    %1847 = vst [vmem:[#allocation2 + $0x8] sm:$0xff] %v1830
    %1848 = vst [vmem:[#allocation2 + $0x10] sm:$0xff] %v1799
    %1849 = vst [vmem:[#allocation2 + $0x18] sm:$0xff] %v1831
    // Predicated region
    $region38: #{tpu_custom_call.1} parent=1 // pred_check
      _
    $region39: #{tpu_custom_call.1} parent=1 // pred_check_branch
      %1851 = sbr.rel (0) target = $region41
    $region40: #{tpu_custom_call.1} parent=1 // pred_region
      %s1853 = ssub.s32 512, 512
      %1854 = vsyncadd [#allocation3], %s1853
      %s1855 = sshll.u32 [#allocation2], 4
      %s1856 = int_to_ptr.vmem [resolvable:$true] %s1855
      %1861 = dma.vmem_to_hbm [thread:$0]  %s1856, 512, %s9, [#allocation3], 256, 256, 16
    $region41: #{tpu_custom_call.1} parent=1 // pred_fallthru
      _
    // Predicated region
    $region42: #{tpu_custom_call.1} parent=1 // pred_check
      _
    $region43: #{tpu_custom_call.1} parent=1 // pred_check_branch
      %1863 = sbr.rel (0) target = $region45
    $region44: #{tpu_custom_call.1} parent=1 // pred_region
      %1864 = dma.done [#allocation3], 512
    $region45: #{tpu_custom_call.1} parent=1 // pred_fallthru
      _
    %1865 = vsyncpa [#allocation3], 1

</llo_original>
